<compile_context>
chip_gen: v6e
topology: v6e:2x2x1
jax: 0.10.0
libtpu: 0.0.40
codegen_flags: <defaults>
</compile_context>

<pallas_src>
import numpy as np
import jax
import jax.numpy as jnp
from jax.experimental import pallas as pl
from jax.experimental.pallas import tpu as pltpu

# ----- hyperparameters (small shapes consistent with the module) -----
IMAGE_SIZE = 16
PATCH = 2
CHANNELS = 8                 # == patch_dim (Rearrange 'b c (h p1) -> b h (p1 c)')
D = 32                       # dim
DEPTH = 2
HEADS = 8
HEAD_DIM = D // HEADS        # 4
MLP_DIM = 12
NUM_PATCHES = IMAGE_SIZE // PATCH       # 8
NTOK = NUM_PATCHES + 1                  # 9 (cls + patches)
PATCH_IN = PATCH * CHANNELS             # 16
SCALE = HEAD_DIM ** -0.5
EPS = 1e-5
SLAB_W = 128                 # slab lane width (>= 3*D for the fused Wqkv block)


def _align8(n):
    return ((n + 7) // 8) * 8


def _build_layout(bsz):
    """Static 8-row-aligned layout of the packed (rows, SLAB_W) slab."""
    bn = bsz * NTOK
    layout = {}
    row = 0

    def add(name, shape):
        nonlocal row
        layout[name] = (row, shape)
        row += _align8(shape[0])

    # constant grouping / selection matrices (batch-size dependent)
    add("G", (D, HEADS))          # block-diag head grouping
    add("GT", (HEADS, D))
    add("BB", (bn, bn))           # same-batch indicator (broadcast + segment-sum)
    add("BC", (bn, bn))           # cls-row broadcast within each batch
    add("TILE", (bn, NTOK))       # per-batch positional tiling; col 0 == is_cls
    add("CSEL", (bsz, bn))        # cls-row selection for the final output
    # parameters
    add("patch_w", (PATCH_IN, D)); add("patch_b", (1, D))
    add("cls", (1, D)); add("pos", (NTOK, D))
    add("tn_g", (1, D)); add("tn_b", (1, D))
    for l in range(DEPTH):
        add(f"pna_g{l}", (1, D)); add(f"pna_b{l}", (1, D))
        add(f"wqkv{l}", (D, 3 * D))
        add(f"proj_w{l}", (D, D)); add(f"proj_b{l}", (1, D))
        add(f"pnf_g{l}", (1, D)); add(f"pnf_b{l}", (1, D))
        add(f"ff_w1{l}", (D, MLP_DIM)); add(f"ff_b1{l}", (1, MLP_DIM))
        add(f"ff_w2{l}", (MLP_DIM, D)); add(f"ff_b2{l}", (1, D))
    return layout, row


def _ln(x, g, b):
    """PyTorch nn.LayerNorm over the last dim (population variance, eps inside sqrt)."""
    mu = jnp.mean(x, axis=-1, keepdims=True)
    var = jnp.mean((x - mu) ** 2, axis=-1, keepdims=True)
    return (x - mu) * jax.lax.rsqrt(var + EPS) * g + b


# =========================== fused ViT forward kernel ===========================

def _make_kernel(layout, bsz):
    f32 = jnp.float32

    def kernel(tok_ref, slab_ref, out_ref):
        def L(name):
            r, (nr, nc) = layout[name]
            return slab_ref[r:r + nr, 0:nc]

        # constants (loaded once)
        g_mat = L("G")
        gt_mat = L("GT")
        bb = L("BB")
        bc = L("BC")
        tile = L("TILE")
        csel = L("CSEL")
        is_cls = tile[:, 0:1] > 0.5                     # (BN, 1) cls-row mask

        tn_g = L("tn_g")
        tn_b = L("tn_b")

        # ---- patch embedding + cls token + positional embedding (whole batch) ----
        tok = tok_ref[...]                              # (BN, PATCH_IN), cls rows zero
        pe = jnp.dot(tok, L("patch_w"), preferred_element_type=f32) + L("patch_b")
        pos_b = jnp.dot(tile, L("pos"), preferred_element_type=f32)   # pos tiled per batch
        x = jnp.where(is_cls, L("cls"), pe) + pos_b     # emb_dropout = identity (eval)

        # ---- transformer layers (statically unrolled; everything stays on-chip) ----
        for l in range(DEPTH):
            pna_g = L(f"pna_g{l}"); pna_b = L(f"pna_b{l}")
            wqkv = L(f"wqkv{l}")                        # wq columns pre-scaled by SCALE
            proj_w = L(f"proj_w{l}"); proj_b = L(f"proj_b{l}")
            pnf_g = L(f"pnf_g{l}"); pnf_b = L(f"pnf_b{l}")
            w1 = L(f"ff_w1{l}"); b1 = L(f"ff_b1{l}")
            w2 = L(f"ff_w2{l}"); b2 = L(f"ff_b2{l}")

            # shared LayerNorm statistics for PreNorm(attn) and Transformer.norm
            mu = jnp.mean(x, axis=-1, keepdims=True)
            var = jnp.mean((x - mu) ** 2, axis=-1, keepdims=True)
            xhat = (x - mu) * jax.lax.rsqrt(var + EPS)
            y = xhat * pna_g + pna_b                    # PreNorm before attention
            x_tn = xhat * tn_g + tn_b                   # Transformer.norm(x) (rows 1: used)

            # fused qkv projection (one MXU weight push), q/k/v as lane slices
            qkv = jnp.dot(y, wqkv, preferred_element_type=f32)        # (BN, 3D)
            q = qkv[:, 0:D]
            k = qkv[:, D:2 * D]
            v = qkv[:, 2 * D:3 * D]
            q_bcast = jnp.dot(bc, q, preferred_element_type=f32)      # cls-row q per batch

            # per-head scores via block-diagonal grouping (no per-head / per-batch loop)
            s = jnp.dot(q_bcast * k, g_mat, preferred_element_type=f32)   # (BN, H)
            # column-wise global shift is constant within each batch -> softmax-invariant
            s = s - jnp.max(s, axis=0, keepdims=True)
            e = jnp.exp(s)
            denom = jnp.dot(bb, e, preferred_element_type=f32)        # per-batch sums, broadcast
            p = e * pl.reciprocal(denom, approx=False)                # softmax over tokens
            p_full = jnp.dot(p, gt_mat, preferred_element_type=f32)   # (BN, D)
            o = jnp.dot(bb, p_full * v, preferred_element_type=f32)   # per-batch attn out, broadcast
            a = jnp.dot(o, proj_w, preferred_element_type=f32) + proj_b

            # x = cat(y_cls + attn_out, Transformer.norm(x[:, 1:, :]))
            # (DropPath = identity in eval)
            x = jnp.where(is_cls, y + a, x_tn)

            # PreNorm + FeedForward + residual
            h = _ln(x, pnf_g, pnf_b)
            h = jnp.dot(h, w1, preferred_element_type=f32) + b1
            # TODO(synk): PyTorch nn.GELU default is exact (erf); tanh approximation used in-kernel.
            h = jax.nn.gelu(h, approximate=True)
            h = jnp.dot(h, w2, preferred_element_type=f32) + b2
            x = x + h

        # ---- cls pooling: single (B, D) store ----
        out_ref[...] = jnp.dot(csel, x, preferred_element_type=f32).astype(out_ref.dtype)

    return kernel


# ================================ wrapper =====================================

def vit_forward(slab, img):
    """img: (B, CHANNELS, IMAGE_SIZE) in PyTorch NCL layout -> (B, D) cls output."""
    bsz = img.shape[0]
    layout, nrows = _build_layout(bsz)
    assert slab.shape == (nrows, SLAB_W), (slab.shape, (nrows, SLAB_W))

    # Rearrange('b c (h p1) -> b h (p1 c)') as one tiny XLA op, plus one zero cls
    # row per batch so the in-kernel patch matmul directly yields NTOK rows
    # (cls rows are replaced by the cls token inside the kernel).
    t = img.reshape(bsz, CHANNELS, NUM_PATCHES, PATCH)
    t = jnp.transpose(t, (0, 2, 3, 1)).reshape(bsz, NUM_PATCHES, PATCH_IN)
    t = jnp.concatenate([jnp.zeros((bsz, 1, PATCH_IN), t.dtype), t], axis=1)
    t = t.reshape(bsz * NTOK, PATCH_IN)

    kernel = _make_kernel(layout, bsz)
    return pl.pallas_call(
        kernel,
        out_shape=jax.ShapeDtypeStruct((bsz, D), jnp.float32),
        in_specs=[pl.BlockSpec(memory_space=pltpu.MemorySpace.VMEM)] * 2,
        out_specs=pl.BlockSpec(memory_space=pltpu.MemorySpace.VMEM),
    )(t, slab)


# ============================ parameter init / packing ========================

def init_params(key):
    keys = iter(jax.random.split(key, 32))

    def w(shape, scale=0.1):
        return (scale * jax.random.normal(next(keys), shape)).astype(jnp.float32)

    ones = lambda *s: jnp.ones(s, jnp.float32)
    zeros = lambda *s: jnp.zeros(s, jnp.float32)

    # Linear weights stored as (in, out) so y = x @ W.
    return dict(
        patch_w=w((PATCH_IN, D)), patch_b=w((1, D)),
        cls_token=w((1, D), 1.0), pos_emb=w((NTOK, D), 1.0),
        tnorm_g=ones(1, D), tnorm_b=zeros(1, D),               # Transformer-level shared LayerNorm
        pna_g=ones(DEPTH, 1, D), pna_b=zeros(DEPTH, 1, D),     # PreNorm before CrossAttentionBlock
        wqkv=w((DEPTH * 3, D, D)),                             # [wq_l, wk_l, wv_l] (qkv_bias=False)
        proj_w=w((DEPTH, D, D)), proj_b=w((DEPTH, 1, D)),
        pnf_g=ones(DEPTH, 1, D), pnf_b=zeros(DEPTH, 1, D),     # PreNorm before FeedForward
        ff_w1=w((DEPTH, D, MLP_DIM)), ff_b1=w((DEPTH, 1, MLP_DIM)),
        ff_w2=w((DEPTH, MLP_DIM, D)), ff_b2=w((DEPTH, 1, D)),
    )


def pack_params(params, bsz):
    """Pack all parameters + constant selection matrices into one (R, SLAB_W) f32 slab."""
    layout, nrows = _build_layout(bsz)
    slab = np.zeros((nrows, SLAB_W), np.float32)

    def put(name, arr):
        r, (nr, nc) = layout[name]
        slab[r:r + nr, :nc] = np.asarray(arr, np.float32).reshape(nr, nc)

    bn = bsz * NTOK
    # block-diagonal head grouping matrices
    c = np.arange(D)[:, None] // HEAD_DIM
    g = (c == np.arange(HEADS)[None, :]).astype(np.float32)           # (D, H)
    put("G", g)
    put("GT", g.T)
    # per-batch segment / broadcast / selection matrices
    i = np.arange(bn)
    same_batch = (i[:, None] // NTOK) == (i[None, :] // NTOK)
    put("BB", same_batch.astype(np.float32))
    put("BC", (same_batch & ((i[None, :] % NTOK) == 0)).astype(np.float32))
    put("TILE", ((i[:, None] % NTOK) == np.arange(NTOK)[None, :]).astype(np.float32))
    put("CSEL", (i[None, :] == (np.arange(bsz)[:, None] * NTOK)).astype(np.float32))

    # parameters
    put("patch_w", params["patch_w"]); put("patch_b", params["patch_b"])
    put("cls", params["cls_token"]); put("pos", params["pos_emb"])
    put("tn_g", params["tnorm_g"]); put("tn_b", params["tnorm_b"])
    for l in range(DEPTH):
        put(f"pna_g{l}", params["pna_g"][l]); put(f"pna_b{l}", params["pna_b"][l])
        wq = np.asarray(params["wqkv"][3 * l], np.float32) * SCALE     # fold attn scale into wq
        wk = np.asarray(params["wqkv"][3 * l + 1], np.float32)
        wv = np.asarray(params["wqkv"][3 * l + 2], np.float32)
        put(f"wqkv{l}", np.concatenate([wq, wk, wv], axis=1))
        put(f"proj_w{l}", params["proj_w"][l]); put(f"proj_b{l}", params["proj_b"][l])
        put(f"pnf_g{l}", params["pnf_g"][l]); put(f"pnf_b{l}", params["pnf_b"][l])
        put(f"ff_w1{l}", params["ff_w1"][l]); put(f"ff_b1{l}", params["ff_b1"][l])
        put(f"ff_w2{l}", params["ff_w2"][l]); put(f"ff_b2{l}", params["ff_b2"][l])
    return jnp.asarray(slab)


# ========================== pure-JAX reference ================================

def vit_reference(params, img):
    bsz = img.shape[0]
    t = img.reshape(bsz, CHANNELS, NUM_PATCHES, PATCH)
    t = jnp.transpose(t, (0, 2, 3, 1)).reshape(bsz, NUM_PATCHES, PATCH_IN)
    tok = t @ params["patch_w"] + params["patch_b"][0]
    cls = jnp.broadcast_to(params["cls_token"].reshape(1, 1, D), (bsz, 1, D))
    x = jnp.concatenate([cls, tok], axis=1) + params["pos_emb"][None]

    def ln(z, g, b):
        mu = z.mean(-1, keepdims=True)
        var = ((z - mu) ** 2).mean(-1, keepdims=True)
        return (z - mu) / jnp.sqrt(var + EPS) * g + b

    for l in range(DEPTH):
        y = ln(x, params["pna_g"][l, 0], params["pna_b"][l, 0])
        q = (y[:, 0:1] @ params["wqkv"][3 * l + 0]).reshape(bsz, 1, HEADS, HEAD_DIM).transpose(0, 2, 1, 3)
        k = (y @ params["wqkv"][3 * l + 1]).reshape(bsz, NTOK, HEADS, HEAD_DIM).transpose(0, 2, 1, 3)
        v = (y @ params["wqkv"][3 * l + 2]).reshape(bsz, NTOK, HEADS, HEAD_DIM).transpose(0, 2, 1, 3)
        att = jax.nn.softmax((q @ jnp.swapaxes(k, -2, -1)) * SCALE, axis=-1)
        o = (att @ v).transpose(0, 2, 1, 3).reshape(bsz, 1, D)
        o = o @ params["proj_w"][l] + params["proj_b"][l, 0]
        attn_out = y[:, 0:1] + o
        x = jnp.concatenate(
            [attn_out, ln(x[:, 1:], params["tnorm_g"][0], params["tnorm_b"][0])], axis=1)
        h = ln(x, params["pnf_g"][l, 0], params["pnf_b"][l, 0])
        h = jax.nn.gelu(h @ params["ff_w1"][l] + params["ff_b1"][l, 0], approximate=True)
        h = h @ params["ff_w2"][l] + params["ff_b2"][l, 0]
        x = x + h
    return x[:, 0]


# ================================== main ======================================

if __name__ == "__main__":
    key = jax.random.PRNGKey(0)
    pkey, xkey = jax.random.split(key)
    params = init_params(pkey)
    img = jax.random.normal(xkey, (2, CHANNELS, IMAGE_SIZE), dtype=jnp.float32)

    slab = pack_params(params, bsz=2)        # one-time parameter packing (outside jit)
    out = jax.jit(vit_forward)(slab, img)
    jax.block_until_ready(out)
    assert out.shape == (2, D)

    ref = vit_reference(params, img)
    assert jnp.allclose(out, ref, atol=1e-4, rtol=1e-4), \
        f"max abs err {jnp.max(jnp.abs(out - ref))}"
    print("KERNEL_OK")
</pallas_src>

<mosaic_0001>
module attributes {stable_mosaic.version = 11 : i64} {
  func.func @kernel(%arg0: memref<18x16xf32, #tpu.memory_space<vmem>>, %arg1: memref<520x128xf32, #tpu.memory_space<vmem>>, %arg2: memref<2x32xf32, #tpu.memory_space<vmem>>) attributes {dimension_semantics = [], scalar_prefetch = 0 : i64, scratch_operands = 0 : i64, tpu.core_type = #tpu.core_type<tc>} {
    %c0 = arith.constant 0 : index
    %c0_0 = arith.constant 0 : index
    %0 = vector.load %arg1[%c0, %c0_0] : memref<520x128xf32, #tpu.memory_space<vmem>>, vector<32x8xf32>
    %c32 = arith.constant 32 : index
    %c0_1 = arith.constant 0 : index
    %1 = vector.load %arg1[%c32, %c0_1] : memref<520x128xf32, #tpu.memory_space<vmem>>, vector<8x32xf32>
    %c40 = arith.constant 40 : index
    %c0_2 = arith.constant 0 : index
    %2 = vector.load %arg1[%c40, %c0_2] : memref<520x128xf32, #tpu.memory_space<vmem>>, vector<18x18xf32>
    %c64 = arith.constant 64 : index
    %c0_3 = arith.constant 0 : index
    %3 = vector.load %arg1[%c64, %c0_3] : memref<520x128xf32, #tpu.memory_space<vmem>>, vector<18x18xf32>
    %c88 = arith.constant 88 : index
    %c0_4 = arith.constant 0 : index
    %4 = vector.load %arg1[%c88, %c0_4] : memref<520x128xf32, #tpu.memory_space<vmem>>, vector<18x9xf32>
    %c112 = arith.constant 112 : index
    %c0_5 = arith.constant 0 : index
    %5 = vector.load %arg1[%c112, %c0_5] : memref<520x128xf32, #tpu.memory_space<vmem>>, vector<2x18xf32>
    %6 = vector.extract_strided_slice %4 {offsets = [0, 0], sizes = [18, 1], strides = [1, 1]} : vector<18x9xf32> to vector<18x1xf32>
    %cst = arith.constant 5.000000e-01 : f32
    %7 = vector.broadcast %cst : f32 to vector<18x1xf32>
    %8 = arith.cmpf ogt, %6, %7 : vector<18x1xf32>
    %c168 = arith.constant 168 : index
    %c0_6 = arith.constant 0 : index
    %9 = vector.load %arg1[%c168, %c0_6] : memref<520x128xf32, #tpu.memory_space<vmem>>, vector<1x32xf32>
    %c176 = arith.constant 176 : index
    %c0_7 = arith.constant 0 : index
    %10 = vector.load %arg1[%c176, %c0_7] : memref<520x128xf32, #tpu.memory_space<vmem>>, vector<1x32xf32>
    %c0_8 = arith.constant 0 : index
    %c0_9 = arith.constant 0 : index
    %11 = vector.load %arg0[%c0_8, %c0_9] : memref<18x16xf32, #tpu.memory_space<vmem>>, vector<18x16xf32>
    %c120 = arith.constant 120 : index
    %c0_10 = arith.constant 0 : index
    %12 = vector.load %arg1[%c120, %c0_10] : memref<520x128xf32, #tpu.memory_space<vmem>>, vector<16x32xf32>
    %cst_11 = arith.constant dense<0.000000e+00> : vector<18x32xf32>
    %13 = tpu.matmul %11, %12, %cst_11 {dimension_numbers = #tpu.dot_dimension_numbers<[1], [0], [0], [1], [0, 0, 1, 1], [], []>} : vector<18x16xf32>, vector<16x32xf32>, vector<18x32xf32> -> vector<18x32xf32>
    %c136 = arith.constant 136 : index
    %c0_12 = arith.constant 0 : index
    %14 = vector.load %arg1[%c136, %c0_12] : memref<520x128xf32, #tpu.memory_space<vmem>>, vector<1x32xf32>
    %15 = vector.broadcast %14 : vector<1x32xf32> to vector<18x32xf32>
    %16 = arith.addf %13, %15 : vector<18x32xf32>
    %c152 = arith.constant 152 : index
    %c0_13 = arith.constant 0 : index
    %17 = vector.load %arg1[%c152, %c0_13] : memref<520x128xf32, #tpu.memory_space<vmem>>, vector<9x32xf32>
    %cst_14 = arith.constant dense<0.000000e+00> : vector<18x32xf32>
    %18 = tpu.matmul %4, %17, %cst_14 {dimension_numbers = #tpu.dot_dimension_numbers<[1], [0], [0], [1], [0, 0, 1, 1], [], []>} : vector<18x9xf32>, vector<9x32xf32>, vector<18x32xf32> -> vector<18x32xf32>
    %c144 = arith.constant 144 : index
    %c0_15 = arith.constant 0 : index
    %19 = vector.load %arg1[%c144, %c0_15] : memref<520x128xf32, #tpu.memory_space<vmem>>, vector<1x32xf32>
    %20 = vector.shape_cast %8 : vector<18x1xi1> to vector<18x1xi1>
    %21 = vector.broadcast %20 : vector<18x1xi1> to vector<18x32xi1>
    %22 = vector.shape_cast %19 : vector<1x32xf32> to vector<1x32xf32>
    %23 = vector.broadcast %22 : vector<1x32xf32> to vector<18x32xf32>
    %24 = arith.select %21, %23, %16 : vector<18x32xi1>, vector<18x32xf32>
    %25 = arith.addf %24, %18 : vector<18x32xf32>
    %c184 = arith.constant 184 : index
    %c0_16 = arith.constant 0 : index
    %26 = vector.load %arg1[%c184, %c0_16] : memref<520x128xf32, #tpu.memory_space<vmem>>, vector<1x32xf32>
    %c192 = arith.constant 192 : index
    %c0_17 = arith.constant 0 : index
    %27 = vector.load %arg1[%c192, %c0_17] : memref<520x128xf32, #tpu.memory_space<vmem>>, vector<1x32xf32>
    %c200 = arith.constant 200 : index
    %c0_18 = arith.constant 0 : index
    %28 = vector.load %arg1[%c200, %c0_18] : memref<520x128xf32, #tpu.memory_space<vmem>>, vector<32x96xf32>
    %c232 = arith.constant 232 : index
    %c0_19 = arith.constant 0 : index
    %29 = vector.load %arg1[%c232, %c0_19] : memref<520x128xf32, #tpu.memory_space<vmem>>, vector<32x32xf32>
    %c264 = arith.constant 264 : index
    %c0_20 = arith.constant 0 : index
    %30 = vector.load %arg1[%c264, %c0_20] : memref<520x128xf32, #tpu.memory_space<vmem>>, vector<1x32xf32>
    %c272 = arith.constant 272 : index
    %c0_21 = arith.constant 0 : index
    %31 = vector.load %arg1[%c272, %c0_21] : memref<520x128xf32, #tpu.memory_space<vmem>>, vector<1x32xf32>
    %c280 = arith.constant 280 : index
    %c0_22 = arith.constant 0 : index
    %32 = vector.load %arg1[%c280, %c0_22] : memref<520x128xf32, #tpu.memory_space<vmem>>, vector<1x32xf32>
    %c288 = arith.constant 288 : index
    %c0_23 = arith.constant 0 : index
    %33 = vector.load %arg1[%c288, %c0_23] : memref<520x128xf32, #tpu.memory_space<vmem>>, vector<32x12xf32>
    %c320 = arith.constant 320 : index
    %c0_24 = arith.constant 0 : index
    %34 = vector.load %arg1[%c320, %c0_24] : memref<520x128xf32, #tpu.memory_space<vmem>>, vector<1x12xf32>
    %c328 = arith.constant 328 : index
    %c0_25 = arith.constant 0 : index
    %35 = vector.load %arg1[%c328, %c0_25] : memref<520x128xf32, #tpu.memory_space<vmem>>, vector<12x32xf32>
    %c344 = arith.constant 344 : index
    %c0_26 = arith.constant 0 : index
    %36 = vector.load %arg1[%c344, %c0_26] : memref<520x128xf32, #tpu.memory_space<vmem>>, vector<1x32xf32>
    %cst_27 = arith.constant dense<0.000000e+00> : vector<18xf32>
    %37 = vector.multi_reduction <add>, %25, %cst_27 [1] : vector<18x32xf32> to vector<18xf32>
    %38 = vector.shape_cast %37 : vector<18xf32> to vector<18x1xf32>
    %cst_28 = arith.constant 3.200000e+01 : f32
    %39 = vector.broadcast %cst_28 : f32 to vector<18x1xf32>
    %40 = arith.divf %38, %39 : vector<18x1xf32>
    %41 = vector.broadcast %40 : vector<18x1xf32> to vector<18x32xf32>
    %42 = arith.subf %25, %41 : vector<18x32xf32>
    %43 = arith.mulf %42, %42 : vector<18x32xf32>
    %cst_29 = arith.constant dense<0.000000e+00> : vector<18xf32>
    %44 = vector.multi_reduction <add>, %43, %cst_29 [1] : vector<18x32xf32> to vector<18xf32>
    %45 = vector.shape_cast %44 : vector<18xf32> to vector<18x1xf32>
    %cst_30 = arith.constant 3.200000e+01 : f32
    %46 = vector.broadcast %cst_30 : f32 to vector<18x1xf32>
    %47 = arith.divf %45, %46 : vector<18x1xf32>
    %48 = vector.broadcast %40 : vector<18x1xf32> to vector<18x32xf32>
    %49 = arith.subf %25, %48 : vector<18x32xf32>
    %cst_31 = arith.constant 9.99999974E-6 : f32
    %50 = vector.broadcast %cst_31 : f32 to vector<18x1xf32>
    %51 = arith.addf %47, %50 : vector<18x1xf32>
    %52 = math.rsqrt %51 : vector<18x1xf32>
    %53 = vector.broadcast %52 : vector<18x1xf32> to vector<18x32xf32>
    %54 = arith.mulf %49, %53 : vector<18x32xf32>
    %55 = vector.broadcast %26 : vector<1x32xf32> to vector<18x32xf32>
    %56 = arith.mulf %54, %55 : vector<18x32xf32>
    %57 = vector.broadcast %27 : vector<1x32xf32> to vector<18x32xf32>
    %58 = arith.addf %56, %57 : vector<18x32xf32>
    %59 = vector.broadcast %9 : vector<1x32xf32> to vector<18x32xf32>
    %60 = arith.mulf %54, %59 : vector<18x32xf32>
    %61 = vector.broadcast %10 : vector<1x32xf32> to vector<18x32xf32>
    %62 = arith.addf %60, %61 : vector<18x32xf32>
    %cst_32 = arith.constant dense<0.000000e+00> : vector<18x96xf32>
    %63 = tpu.matmul %58, %28, %cst_32 {dimension_numbers = #tpu.dot_dimension_numbers<[1], [0], [0], [1], [0, 0, 1, 1], [], []>} : vector<18x32xf32>, vector<32x96xf32>, vector<18x96xf32> -> vector<18x96xf32>
    %64 = vector.extract_strided_slice %63 {offsets = [0, 0], sizes = [18, 32], strides = [1, 1]} : vector<18x96xf32> to vector<18x32xf32>
    %65 = vector.extract_strided_slice %63 {offsets = [0, 32], sizes = [18, 32], strides = [1, 1]} : vector<18x96xf32> to vector<18x32xf32>
    %66 = vector.extract_strided_slice %63 {offsets = [0, 64], sizes = [18, 32], strides = [1, 1]} : vector<18x96xf32> to vector<18x32xf32>
    %cst_33 = arith.constant dense<0.000000e+00> : vector<18x32xf32>
    %67 = tpu.matmul %3, %64, %cst_33 {dimension_numbers = #tpu.dot_dimension_numbers<[1], [0], [0], [1], [0, 0, 1, 1], [], []>} : vector<18x18xf32>, vector<18x32xf32>, vector<18x32xf32> -> vector<18x32xf32>
    %68 = arith.mulf %67, %65 : vector<18x32xf32>
    %cst_34 = arith.constant dense<0.000000e+00> : vector<18x8xf32>
    %69 = tpu.matmul %68, %0, %cst_34 {dimension_numbers = #tpu.dot_dimension_numbers<[1], [0], [0], [1], [0, 0, 1, 1], [], []>} : vector<18x32xf32>, vector<32x8xf32>, vector<18x8xf32> -> vector<18x8xf32>
    %cst_35 = arith.constant dense<0xFF800000> : vector<8xf32>
    %70 = vector.multi_reduction <maximumf>, %69, %cst_35 [0] : vector<18x8xf32> to vector<8xf32>
    %71 = vector.shape_cast %70 : vector<8xf32> to vector<1x8xf32>
    %72 = vector.broadcast %71 : vector<1x8xf32> to vector<18x8xf32>
    %73 = arith.subf %69, %72 : vector<18x8xf32>
    %74 = math.exp %73 : vector<18x8xf32>
    %cst_36 = arith.constant dense<0.000000e+00> : vector<18x8xf32>
    %75 = tpu.matmul %2, %74, %cst_36 {dimension_numbers = #tpu.dot_dimension_numbers<[1], [0], [0], [1], [0, 0, 1, 1], [], []>} : vector<18x18xf32>, vector<18x8xf32>, vector<18x8xf32> -> vector<18x8xf32>
    %76 = tpu.reciprocal %75 : vector<18x8xf32> -> vector<18x8xf32>
    %77 = arith.mulf %74, %76 : vector<18x8xf32>
    %cst_37 = arith.constant dense<0.000000e+00> : vector<18x32xf32>
    %78 = tpu.matmul %77, %1, %cst_37 {dimension_numbers = #tpu.dot_dimension_numbers<[1], [0], [0], [1], [0, 0, 1, 1], [], []>} : vector<18x8xf32>, vector<8x32xf32>, vector<18x32xf32> -> vector<18x32xf32>
    %79 = arith.mulf %78, %66 : vector<18x32xf32>
    %cst_38 = arith.constant dense<0.000000e+00> : vector<18x32xf32>
    %80 = tpu.matmul %2, %79, %cst_38 {dimension_numbers = #tpu.dot_dimension_numbers<[1], [0], [0], [1], [0, 0, 1, 1], [], []>} : vector<18x18xf32>, vector<18x32xf32>, vector<18x32xf32> -> vector<18x32xf32>
    %cst_39 = arith.constant dense<0.000000e+00> : vector<18x32xf32>
    %81 = tpu.matmul %80, %29, %cst_39 {dimension_numbers = #tpu.dot_dimension_numbers<[1], [0], [0], [1], [0, 0, 1, 1], [], []>} : vector<18x32xf32>, vector<32x32xf32>, vector<18x32xf32> -> vector<18x32xf32>
    %82 = vector.broadcast %30 : vector<1x32xf32> to vector<18x32xf32>
    %83 = arith.addf %81, %82 : vector<18x32xf32>
    %84 = arith.addf %58, %83 : vector<18x32xf32>
    %85 = vector.shape_cast %8 : vector<18x1xi1> to vector<18x1xi1>
    %86 = vector.broadcast %85 : vector<18x1xi1> to vector<18x32xi1>
    %87 = arith.select %86, %84, %62 : vector<18x32xi1>, vector<18x32xf32>
    %cst_40 = arith.constant dense<0.000000e+00> : vector<18xf32>
    %88 = vector.multi_reduction <add>, %87, %cst_40 [1] : vector<18x32xf32> to vector<18xf32>
    %89 = vector.shape_cast %88 : vector<18xf32> to vector<18x1xf32>
    %cst_41 = arith.constant 3.200000e+01 : f32
    %90 = vector.broadcast %cst_41 : f32 to vector<18x1xf32>
    %91 = arith.divf %89, %90 : vector<18x1xf32>
    %92 = vector.broadcast %91 : vector<18x1xf32> to vector<18x32xf32>
    %93 = arith.subf %87, %92 : vector<18x32xf32>
    %94 = arith.mulf %93, %93 : vector<18x32xf32>
    %cst_42 = arith.constant dense<0.000000e+00> : vector<18xf32>
    %95 = vector.multi_reduction <add>, %94, %cst_42 [1] : vector<18x32xf32> to vector<18xf32>
    %96 = vector.shape_cast %95 : vector<18xf32> to vector<18x1xf32>
    %cst_43 = arith.constant 3.200000e+01 : f32
    %97 = vector.broadcast %cst_43 : f32 to vector<18x1xf32>
    %98 = arith.divf %96, %97 : vector<18x1xf32>
    %99 = vector.broadcast %91 : vector<18x1xf32> to vector<18x32xf32>
    %100 = arith.subf %87, %99 : vector<18x32xf32>
    %cst_44 = arith.constant 9.99999974E-6 : f32
    %101 = vector.broadcast %cst_44 : f32 to vector<18x1xf32>
    %102 = arith.addf %98, %101 : vector<18x1xf32>
    %103 = math.rsqrt %102 : vector<18x1xf32>
    %104 = vector.broadcast %103 : vector<18x1xf32> to vector<18x32xf32>
    %105 = arith.mulf %100, %104 : vector<18x32xf32>
    %106 = vector.broadcast %31 : vector<1x32xf32> to vector<18x32xf32>
    %107 = arith.mulf %105, %106 : vector<18x32xf32>
    %108 = vector.broadcast %32 : vector<1x32xf32> to vector<18x32xf32>
    %109 = arith.addf %107, %108 : vector<18x32xf32>
    %cst_45 = arith.constant dense<0.000000e+00> : vector<18x12xf32>
    %110 = tpu.matmul %109, %33, %cst_45 {dimension_numbers = #tpu.dot_dimension_numbers<[1], [0], [0], [1], [0, 0, 1, 1], [], []>} : vector<18x32xf32>, vector<32x12xf32>, vector<18x12xf32> -> vector<18x12xf32>
    %111 = vector.broadcast %34 : vector<1x12xf32> to vector<18x12xf32>
    %112 = arith.addf %110, %111 : vector<18x12xf32>
    %113 = arith.mulf %112, %112 : vector<18x12xf32>
    %114 = arith.mulf %112, %113 : vector<18x12xf32>
    %cst_46 = arith.constant 4.471500e-02 : f32
    %115 = vector.broadcast %cst_46 : f32 to vector<18x12xf32>
    %116 = arith.mulf %115, %114 : vector<18x12xf32>
    %117 = arith.addf %112, %116 : vector<18x12xf32>
    %cst_47 = arith.constant 0.797884583 : f32
    %118 = vector.broadcast %cst_47 : f32 to vector<18x12xf32>
    %119 = arith.mulf %118, %117 : vector<18x12xf32>
    %120 = math.tanh %119 : vector<18x12xf32>
    %cst_48 = arith.constant 1.000000e+00 : f32
    %121 = vector.broadcast %cst_48 : f32 to vector<18x12xf32>
    %122 = arith.addf %121, %120 : vector<18x12xf32>
    %cst_49 = arith.constant 5.000000e-01 : f32
    %123 = vector.broadcast %cst_49 : f32 to vector<18x12xf32>
    %124 = arith.mulf %123, %122 : vector<18x12xf32>
    %125 = arith.mulf %112, %124 : vector<18x12xf32>
    %cst_50 = arith.constant dense<0.000000e+00> : vector<18x32xf32>
    %126 = tpu.matmul %125, %35, %cst_50 {dimension_numbers = #tpu.dot_dimension_numbers<[1], [0], [0], [1], [0, 0, 1, 1], [], []>} : vector<18x12xf32>, vector<12x32xf32>, vector<18x32xf32> -> vector<18x32xf32>
    %127 = vector.broadcast %36 : vector<1x32xf32> to vector<18x32xf32>
    %128 = arith.addf %126, %127 : vector<18x32xf32>
    %129 = arith.addf %87, %128 : vector<18x32xf32>
    %c352 = arith.constant 352 : index
    %c0_51 = arith.constant 0 : index
    %130 = vector.load %arg1[%c352, %c0_51] : memref<520x128xf32, #tpu.memory_space<vmem>>, vector<1x32xf32>
    %c360 = arith.constant 360 : index
    %c0_52 = arith.constant 0 : index
    %131 = vector.load %arg1[%c360, %c0_52] : memref<520x128xf32, #tpu.memory_space<vmem>>, vector<1x32xf32>
    %c368 = arith.constant 368 : index
    %c0_53 = arith.constant 0 : index
    %132 = vector.load %arg1[%c368, %c0_53] : memref<520x128xf32, #tpu.memory_space<vmem>>, vector<32x96xf32>
    %c400 = arith.constant 400 : index
    %c0_54 = arith.constant 0 : index
    %133 = vector.load %arg1[%c400, %c0_54] : memref<520x128xf32, #tpu.memory_space<vmem>>, vector<32x32xf32>
    %c432 = arith.constant 432 : index
    %c0_55 = arith.constant 0 : index
    %134 = vector.load %arg1[%c432, %c0_55] : memref<520x128xf32, #tpu.memory_space<vmem>>, vector<1x32xf32>
    %c440 = arith.constant 440 : index
    %c0_56 = arith.constant 0 : index
    %135 = vector.load %arg1[%c440, %c0_56] : memref<520x128xf32, #tpu.memory_space<vmem>>, vector<1x32xf32>
    %c448 = arith.constant 448 : index
    %c0_57 = arith.constant 0 : index
    %136 = vector.load %arg1[%c448, %c0_57] : memref<520x128xf32, #tpu.memory_space<vmem>>, vector<1x32xf32>
    %c456 = arith.constant 456 : index
    %c0_58 = arith.constant 0 : index
    %137 = vector.load %arg1[%c456, %c0_58] : memref<520x128xf32, #tpu.memory_space<vmem>>, vector<32x12xf32>
    %c488 = arith.constant 488 : index
    %c0_59 = arith.constant 0 : index
    %138 = vector.load %arg1[%c488, %c0_59] : memref<520x128xf32, #tpu.memory_space<vmem>>, vector<1x12xf32>
    %c496 = arith.constant 496 : index
    %c0_60 = arith.constant 0 : index
    %139 = vector.load %arg1[%c496, %c0_60] : memref<520x128xf32, #tpu.memory_space<vmem>>, vector<12x32xf32>
    %c512 = arith.constant 512 : index
    %c0_61 = arith.constant 0 : index
    %140 = vector.load %arg1[%c512, %c0_61] : memref<520x128xf32, #tpu.memory_space<vmem>>, vector<1x32xf32>
    %cst_62 = arith.constant dense<0.000000e+00> : vector<18xf32>
    %141 = vector.multi_reduction <add>, %129, %cst_62 [1] : vector<18x32xf32> to vector<18xf32>
    %142 = vector.shape_cast %141 : vector<18xf32> to vector<18x1xf32>
    %cst_63 = arith.constant 3.200000e+01 : f32
    %143 = vector.broadcast %cst_63 : f32 to vector<18x1xf32>
    %144 = arith.divf %142, %143 : vector<18x1xf32>
    %145 = vector.broadcast %144 : vector<18x1xf32> to vector<18x32xf32>
    %146 = arith.subf %129, %145 : vector<18x32xf32>
    %147 = arith.mulf %146, %146 : vector<18x32xf32>
    %cst_64 = arith.constant dense<0.000000e+00> : vector<18xf32>
    %148 = vector.multi_reduction <add>, %147, %cst_64 [1] : vector<18x32xf32> to vector<18xf32>
    %149 = vector.shape_cast %148 : vector<18xf32> to vector<18x1xf32>
    %cst_65 = arith.constant 3.200000e+01 : f32
    %150 = vector.broadcast %cst_65 : f32 to vector<18x1xf32>
    %151 = arith.divf %149, %150 : vector<18x1xf32>
    %152 = vector.broadcast %144 : vector<18x1xf32> to vector<18x32xf32>
    %153 = arith.subf %129, %152 : vector<18x32xf32>
    %cst_66 = arith.constant 9.99999974E-6 : f32
    %154 = vector.broadcast %cst_66 : f32 to vector<18x1xf32>
    %155 = arith.addf %151, %154 : vector<18x1xf32>
    %156 = math.rsqrt %155 : vector<18x1xf32>
    %157 = vector.broadcast %156 : vector<18x1xf32> to vector<18x32xf32>
    %158 = arith.mulf %153, %157 : vector<18x32xf32>
    %159 = vector.broadcast %130 : vector<1x32xf32> to vector<18x32xf32>
    %160 = arith.mulf %158, %159 : vector<18x32xf32>
    %161 = vector.broadcast %131 : vector<1x32xf32> to vector<18x32xf32>
    %162 = arith.addf %160, %161 : vector<18x32xf32>
    %163 = vector.broadcast %9 : vector<1x32xf32> to vector<18x32xf32>
    %164 = arith.mulf %158, %163 : vector<18x32xf32>
    %165 = vector.broadcast %10 : vector<1x32xf32> to vector<18x32xf32>
    %166 = arith.addf %164, %165 : vector<18x32xf32>
    %cst_67 = arith.constant dense<0.000000e+00> : vector<18x96xf32>
    %167 = tpu.matmul %162, %132, %cst_67 {dimension_numbers = #tpu.dot_dimension_numbers<[1], [0], [0], [1], [0, 0, 1, 1], [], []>} : vector<18x32xf32>, vector<32x96xf32>, vector<18x96xf32> -> vector<18x96xf32>
    %168 = vector.extract_strided_slice %167 {offsets = [0, 0], sizes = [18, 32], strides = [1, 1]} : vector<18x96xf32> to vector<18x32xf32>
    %169 = vector.extract_strided_slice %167 {offsets = [0, 32], sizes = [18, 32], strides = [1, 1]} : vector<18x96xf32> to vector<18x32xf32>
    %170 = vector.extract_strided_slice %167 {offsets = [0, 64], sizes = [18, 32], strides = [1, 1]} : vector<18x96xf32> to vector<18x32xf32>
    %cst_68 = arith.constant dense<0.000000e+00> : vector<18x32xf32>
    %171 = tpu.matmul %3, %168, %cst_68 {dimension_numbers = #tpu.dot_dimension_numbers<[1], [0], [0], [1], [0, 0, 1, 1], [], []>} : vector<18x18xf32>, vector<18x32xf32>, vector<18x32xf32> -> vector<18x32xf32>
    %172 = arith.mulf %171, %169 : vector<18x32xf32>
    %cst_69 = arith.constant dense<0.000000e+00> : vector<18x8xf32>
    %173 = tpu.matmul %172, %0, %cst_69 {dimension_numbers = #tpu.dot_dimension_numbers<[1], [0], [0], [1], [0, 0, 1, 1], [], []>} : vector<18x32xf32>, vector<32x8xf32>, vector<18x8xf32> -> vector<18x8xf32>
    %cst_70 = arith.constant dense<0xFF800000> : vector<8xf32>
    %174 = vector.multi_reduction <maximumf>, %173, %cst_70 [0] : vector<18x8xf32> to vector<8xf32>
    %175 = vector.shape_cast %174 : vector<8xf32> to vector<1x8xf32>
    %176 = vector.broadcast %175 : vector<1x8xf32> to vector<18x8xf32>
    %177 = arith.subf %173, %176 : vector<18x8xf32>
    %178 = math.exp %177 : vector<18x8xf32>
    %cst_71 = arith.constant dense<0.000000e+00> : vector<18x8xf32>
    %179 = tpu.matmul %2, %178, %cst_71 {dimension_numbers = #tpu.dot_dimension_numbers<[1], [0], [0], [1], [0, 0, 1, 1], [], []>} : vector<18x18xf32>, vector<18x8xf32>, vector<18x8xf32> -> vector<18x8xf32>
    %180 = tpu.reciprocal %179 : vector<18x8xf32> -> vector<18x8xf32>
    %181 = arith.mulf %178, %180 : vector<18x8xf32>
    %cst_72 = arith.constant dense<0.000000e+00> : vector<18x32xf32>
    %182 = tpu.matmul %181, %1, %cst_72 {dimension_numbers = #tpu.dot_dimension_numbers<[1], [0], [0], [1], [0, 0, 1, 1], [], []>} : vector<18x8xf32>, vector<8x32xf32>, vector<18x32xf32> -> vector<18x32xf32>
    %183 = arith.mulf %182, %170 : vector<18x32xf32>
    %cst_73 = arith.constant dense<0.000000e+00> : vector<18x32xf32>
    %184 = tpu.matmul %2, %183, %cst_73 {dimension_numbers = #tpu.dot_dimension_numbers<[1], [0], [0], [1], [0, 0, 1, 1], [], []>} : vector<18x18xf32>, vector<18x32xf32>, vector<18x32xf32> -> vector<18x32xf32>
    %cst_74 = arith.constant dense<0.000000e+00> : vector<18x32xf32>
    %185 = tpu.matmul %184, %133, %cst_74 {dimension_numbers = #tpu.dot_dimension_numbers<[1], [0], [0], [1], [0, 0, 1, 1], [], []>} : vector<18x32xf32>, vector<32x32xf32>, vector<18x32xf32> -> vector<18x32xf32>
    %186 = vector.broadcast %134 : vector<1x32xf32> to vector<18x32xf32>
    %187 = arith.addf %185, %186 : vector<18x32xf32>
    %188 = arith.addf %162, %187 : vector<18x32xf32>
    %189 = vector.shape_cast %8 : vector<18x1xi1> to vector<18x1xi1>
    %190 = vector.broadcast %189 : vector<18x1xi1> to vector<18x32xi1>
    %191 = arith.select %190, %188, %166 : vector<18x32xi1>, vector<18x32xf32>
    %cst_75 = arith.constant dense<0.000000e+00> : vector<18xf32>
    %192 = vector.multi_reduction <add>, %191, %cst_75 [1] : vector<18x32xf32> to vector<18xf32>
    %193 = vector.shape_cast %192 : vector<18xf32> to vector<18x1xf32>
    %cst_76 = arith.constant 3.200000e+01 : f32
    %194 = vector.broadcast %cst_76 : f32 to vector<18x1xf32>
    %195 = arith.divf %193, %194 : vector<18x1xf32>
    %196 = vector.broadcast %195 : vector<18x1xf32> to vector<18x32xf32>
    %197 = arith.subf %191, %196 : vector<18x32xf32>
    %198 = arith.mulf %197, %197 : vector<18x32xf32>
    %cst_77 = arith.constant dense<0.000000e+00> : vector<18xf32>
    %199 = vector.multi_reduction <add>, %198, %cst_77 [1] : vector<18x32xf32> to vector<18xf32>
    %200 = vector.shape_cast %199 : vector<18xf32> to vector<18x1xf32>
    %cst_78 = arith.constant 3.200000e+01 : f32
    %201 = vector.broadcast %cst_78 : f32 to vector<18x1xf32>
    %202 = arith.divf %200, %201 : vector<18x1xf32>
    %203 = vector.broadcast %195 : vector<18x1xf32> to vector<18x32xf32>
    %204 = arith.subf %191, %203 : vector<18x32xf32>
    %cst_79 = arith.constant 9.99999974E-6 : f32
    %205 = vector.broadcast %cst_79 : f32 to vector<18x1xf32>
    %206 = arith.addf %202, %205 : vector<18x1xf32>
    %207 = math.rsqrt %206 : vector<18x1xf32>
    %208 = vector.broadcast %207 : vector<18x1xf32> to vector<18x32xf32>
    %209 = arith.mulf %204, %208 : vector<18x32xf32>
    %210 = vector.broadcast %135 : vector<1x32xf32> to vector<18x32xf32>
    %211 = arith.mulf %209, %210 : vector<18x32xf32>
    %212 = vector.broadcast %136 : vector<1x32xf32> to vector<18x32xf32>
    %213 = arith.addf %211, %212 : vector<18x32xf32>
    %cst_80 = arith.constant dense<0.000000e+00> : vector<18x12xf32>
    %214 = tpu.matmul %213, %137, %cst_80 {dimension_numbers = #tpu.dot_dimension_numbers<[1], [0], [0], [1], [0, 0, 1, 1], [], []>} : vector<18x32xf32>, vector<32x12xf32>, vector<18x12xf32> -> vector<18x12xf32>
    %215 = vector.broadcast %138 : vector<1x12xf32> to vector<18x12xf32>
    %216 = arith.addf %214, %215 : vector<18x12xf32>
    %217 = arith.mulf %216, %216 : vector<18x12xf32>
    %218 = arith.mulf %216, %217 : vector<18x12xf32>
    %cst_81 = arith.constant 4.471500e-02 : f32
    %219 = vector.broadcast %cst_81 : f32 to vector<18x12xf32>
    %220 = arith.mulf %219, %218 : vector<18x12xf32>
    %221 = arith.addf %216, %220 : vector<18x12xf32>
    %cst_82 = arith.constant 0.797884583 : f32
    %222 = vector.broadcast %cst_82 : f32 to vector<18x12xf32>
    %223 = arith.mulf %222, %221 : vector<18x12xf32>
    %224 = math.tanh %223 : vector<18x12xf32>
    %cst_83 = arith.constant 1.000000e+00 : f32
    %225 = vector.broadcast %cst_83 : f32 to vector<18x12xf32>
    %226 = arith.addf %225, %224 : vector<18x12xf32>
    %cst_84 = arith.constant 5.000000e-01 : f32
    %227 = vector.broadcast %cst_84 : f32 to vector<18x12xf32>
    %228 = arith.mulf %227, %226 : vector<18x12xf32>
    %229 = arith.mulf %216, %228 : vector<18x12xf32>
    %cst_85 = arith.constant dense<0.000000e+00> : vector<18x32xf32>
    %230 = tpu.matmul %229, %139, %cst_85 {dimension_numbers = #tpu.dot_dimension_numbers<[1], [0], [0], [1], [0, 0, 1, 1], [], []>} : vector<18x12xf32>, vector<12x32xf32>, vector<18x32xf32> -> vector<18x32xf32>
    %231 = vector.broadcast %140 : vector<1x32xf32> to vector<18x32xf32>
    %232 = arith.addf %230, %231 : vector<18x32xf32>
    %233 = arith.addf %191, %232 : vector<18x32xf32>
    %cst_86 = arith.constant dense<0.000000e+00> : vector<2x32xf32>
    %234 = tpu.matmul %5, %233, %cst_86 {dimension_numbers = #tpu.dot_dimension_numbers<[1], [0], [0], [1], [0, 0, 1, 1], [], []>} : vector<2x18xf32>, vector<18x32xf32>, vector<2x32xf32> -> vector<2x32xf32>
    %c0_87 = arith.constant 0 : index
    %c0_88 = arith.constant 0 : index
    %235 = vector.load %arg2[%c0_87, %c0_88] : memref<2x32xf32, #tpu.memory_space<vmem>>, vector<2x32xf32>
    tpu.vector_store %arg2[%c0_87, %c0_88], %234 {strides = array<i32>} : memref<2x32xf32, #tpu.memory_space<vmem>>, vector<2x32xf32>,
    return
  }
}

</mosaic_0001>

<llo_original>
// kernel: vit_forward.1
$region0: #{vit_forward.1}
  #allocation0 [shape = 'u32[]', space=smem, size = 0x4, offset = 0x4, fixed_abs, tag = 'smem constant byte address 0x4 - core index']
  #allocation1 [shape = 'u32[144,128]{1,0:T(1,128)}', space=vmem, size = 0x12000, scoped, tag = 'internal scratch']
  %s0 = inlined_call_operand.vmem [shape: f32[18,16], index: 0, kind: input, shape index: {}]
  %s1 = inlined_call_operand.hbm [shape: f32[520,128], index: 1, kind: input, shape index: {}]
  %s2 = inlined_call_operand.hbm [shape: f32[2,32], index: 2, kind: output, shape index: {}]
  %s3 = sld [smem:[#allocation0]]
  $region22: #{vit_forward.1} parent=0
    _
  %s5 = ssub.s32 1, %s3
  %s6 = scalar_select 0, %s5, %s3
  $region1: #{vit_forward.1} parent=0
    #allocation2 [shape = 'u8[266240]{0}', space=vmem, size = 0x41000, scoped, tag = 'input window, operand 1, single buffered']
    #allocation3 [shape = 's32[1]{0}', space=sflag, size = 0x4, scoped, tag = 'scoped memory for vit_forward.1']
    #allocation4 [shape = 's32[1]{0}', space=sflag, size = 0x4, scoped, tag = 'scoped memory for vit_forward.1']
    #allocation5 [shape = 'u8[1024]{0}', space=vmem, size = 0x400, scoped, tag = 'output window, operand 0, single buffered']
    %7 = vsyncpa [#allocation3], 0
    %8 = vsyncpa [#allocation4], 0
    // Predicated region
    $region2: #{vit_forward.1} parent=1 // pred_check
      _
    $region3: #{vit_forward.1} parent=1 // pred_check_branch
      %10 = sbr.rel (0) target = $region5
    $region4: #{vit_forward.1} parent=1 // pred_region
      _
    $region5: #{vit_forward.1} parent=1 // pred_fallthru
      _
    // Predicated region
    $region6: #{vit_forward.1} parent=1 // pred_check
      _
    $region7: #{vit_forward.1} parent=1 // pred_check_branch
      %12 = sbr.rel (0) target = $region9
    $region8: #{vit_forward.1} parent=1 // pred_region
      %s14 = ssub.s32 8320, 8320
      %15 = vsyncadd [#allocation3], %s14
      %s16 = sshll.u32 [#allocation2], 4
      %s17 = int_to_ptr.vmem [resolvable:$true] %s16
      %22 = dma.hbm_to_vmem [thread:$0]  %s1, 8320, %s17, [#allocation3], 128, 128, 8
    $region9: #{vit_forward.1} parent=1 // pred_fallthru
      _
    // Predicated region
    $region10: #{vit_forward.1} parent=1 // pred_check
      _
    $region11: #{vit_forward.1} parent=1 // pred_check_branch
      %24 = sbr.rel (0) target = $region13
    $region12: #{vit_forward.1} parent=1 // pred_region
      %25 = dma.done [#allocation3], 8320
    $region13: #{vit_forward.1} parent=1 // pred_fallthru
      _
    %v26 = vld [vmem:[#allocation2] sm:$0xff]
    %v27 = vld [vmem:[#allocation2 + $0x8] sm:$0xff]
    %v28 = vld [vmem:[#allocation2 + $0x10] sm:$0xff]
    %v29 = vld [vmem:[#allocation2 + $0x18] sm:$0xff]
    %v30 = vld [vmem:[#allocation2 + $0x20] sm:$0xff]
    %v31 = vld [vmem:[#allocation2 + $0x28] sm:$0xff]
    %v32 = vld [vmem:[#allocation2 + $0x30] sm:$0xff]
    %v33 = vld [vmem:[#allocation2 + $0x38] sm:$0x3]
    %v34 = vld [vmem:[#allocation2 + $0x40] sm:$0xff]
    %v35 = vld [vmem:[#allocation2 + $0x48] sm:$0xff]
    %v36 = vld [vmem:[#allocation2 + $0x50] sm:$0x3]
    %v37 = vld [vmem:[#allocation2 + $0x58] sm:$0xff]
    %v38 = vld [vmem:[#allocation2 + $0x60] sm:$0xff]
    %v39 = vld [vmem:[#allocation2 + $0x68] sm:$0x3]
    %v40 = vld [vmem:[#allocation2 + $0x70] sm:$0x3]
    %vm41 = vcmp.gt.f32.partialorder %v37, 0.5
    %vm42 = vcmp.gt.f32.partialorder %v38, 0.5
    %vm43 = vcmp.gt.f32.partialorder %v39, 0.5
    %v44 = vld [vmem:[#allocation2 + $0xa8] sm:$0x1]
    %v45 = vld [vmem:[#allocation2 + $0xb0] sm:$0x1]
    %v46 = vld [vmem:[%s0] sm:$0xff]
    %v47 = vld [vmem:[%s0 + $0x8] sm:$0xff]
    %v48 = vld [vmem:[%s0 + $0x10] sm:$0x3]
    %v49 = vld [vmem:[#allocation2 + $0x78] sm:$0xff]
    %v50 = vld [vmem:[#allocation2 + $0x80] sm:$0xff]
    %v51 = vld [vmem:[#allocation2 + $0x88] sm:$0x1]
    %v52 = vlaneseq
    %v53 = vshrl.u32 %v52, 7
    %v54 = vsub.s32 0, %v53
    %v55 = vrot.slane %v51, %v54
    %vm56 = vcmask 130048
    %v58 = vsel %vm56, %v46, 0
    %v61 = vsel %vm56, %v47, 0
    %v64 = vsel %vm56, %v48, 0
    %66 = vmatprep.subr.mxu0 0.0
    %67 = vmatpush1.msra.mxu0 0.0
    %68 = vmatprep.subr.mxu0 0.0
    %69 = vmatpush1.msra.mxu0 0.0
    %70 = vmatprep.subr.mxu0 0.0
    %71 = vmatpush1.msra.mxu0 0.0
    %72 = vmatprep.subr.mxu0 0.0
    %73 = vmatpush1.msra.mxu0 0.0
    %74 = vmatprep.subr.mxu0 0.0
    %75 = vmatpush1.msra.mxu0 0.0
    %76 = vmatprep.subr.mxu0 0.0
    %77 = vmatpush1.msra.mxu0 0.0
    %78 = vmatprep.subr.mxu0 0.0
    %79 = vmatpush1.msra.mxu0 0.0
    %80 = vmatprep.subr.mxu0 0.0
    %81 = vmatpush1.msra.mxu0 0.0
    %82 = vmatprep.subr.mxu0 0.0
    %83 = vmatpush1.msra.mxu0 0.0
    %84 = vmatprep.subr.mxu0 0.0
    %85 = vmatpush1.msra.mxu0 0.0
    %86 = vmatprep.subr.mxu0 0.0
    %87 = vmatpush1.msra.mxu0 0.0
    %88 = vmatprep.subr.mxu0 0.0
    %89 = vmatpush1.msra.mxu0 0.0
    %90 = vmatprep.subr.mxu0 0.0
    %91 = vmatpush1.msra.mxu0 0.0
    %92 = vmatprep.subr.mxu0 0.0
    %93 = vmatpush1.msra.mxu0 0.0
    %94 = vmatprep.subr.mxu0 0.0
    %95 = vmatpush1.msra.mxu0 %v50
    %96 = vmatprep.subr.mxu0 0.0
    %97 = vmatpush1.msra.mxu0 %v49
    %98 = vmatprep.subr.mxu0 0.0
    %99 = vmatpush2.msra.mxu0 0.0
    %100 = vmatprep.subr.mxu0 0.0
    %101 = vmatpush2.msra.mxu0 0.0
    %102 = vmatprep.subr.mxu0 0.0
    %103 = vmatpush2.msra.mxu0 0.0
    %104 = vmatprep.subr.mxu0 0.0
    %105 = vmatpush2.msra.mxu0 0.0
    %106 = vmatprep.subr.mxu0 0.0
    %107 = vmatpush2.msra.mxu0 0.0
    %108 = vmatprep.subr.mxu0 0.0
    %109 = vmatpush2.msra.mxu0 0.0
    %110 = vmatprep.subr.mxu0 0.0
    %111 = vmatpush2.msra.mxu0 0.0
    %112 = vmatprep.subr.mxu0 0.0
    %113 = vmatpush2.msra.mxu0 0.0
    %114 = vmatprep.subr.mxu0 0.0
    %115 = vmatpush2.msra.mxu0 0.0
    %116 = vmatprep.subr.mxu0 0.0
    %117 = vmatpush2.msra.mxu0 0.0
    %118 = vmatprep.subr.mxu0 0.0
    %119 = vmatpush2.msra.mxu0 0.0
    %120 = vmatprep.subr.mxu0 0.0
    %121 = vmatpush2.msra.mxu0 0.0
    %122 = vmatprep.subr.mxu0 0.0
    %123 = vmatpush2.msra.mxu0 0.0
    %124 = vmatprep.subr.mxu0 0.0
    %125 = vmatpush2.msra.mxu0 0.0
    %126 = vmatprep.subr.mxu0 0.0
    %127 = vmatpush2.msra.mxu0 0.0
    %128 = vmatprep.subr.mxu0 0.0
    %129 = vmatpush2.msra.mxu0 0.0
    %130 = vmatprep.mubr.f32.mxu0 0.0
    %131 = vmatmul.mubr.f32.gmra.mxu0 %v58
    %v132 = vpop.f32.mrf.mxu0
    %v133 = vadd.f32 %v55, %v132
    %v134 = vpop.f32.mrf.mxu0
    %135 = vmatprep.mubr.f32.mxu0 0.0
    %136 = vmatmul.mubr.f32.gmra.mxu0 %v61
    %v137 = vpop.f32.mrf.mxu0
    %v138 = vadd.f32 %v55, %v137
    %v139 = vpop.f32.mrf.mxu0
    %140 = vmatprep.mubr.f32.mxu0 0.0
    %141 = vmatmul.mubr.f32.gmra.mxu0 %v64
    %v142 = vpop.f32.mrf.mxu0
    %v143 = vadd.f32 %v55, %v142
    %v144 = vpop.f32.mrf.mxu0
    %145 = vdwg.mxu0
    %v146 = vld [vmem:[#allocation2 + $0x98] sm:$0xff]
    %v147 = vld [vmem:[#allocation2 + $0xa0] sm:$0x1]
    %vm148 = vcmask 72704
    %v150 = vsel %vm148, %v37, 0
    %v153 = vsel %vm148, %v38, 0
    %v156 = vsel %vm148, %v39, 0
    %vm158 = vcmask 1040384
    %v160 = vsel %vm158, %v147, 0
    %162 = vmatprep.subr.mxu0 0.0
    %163 = vmatpush1.msra.mxu0 0.0
    %164 = vmatprep.subr.mxu0 0.0
    %165 = vmatpush1.msra.mxu0 0.0
    %166 = vmatprep.subr.mxu0 0.0
    %167 = vmatpush1.msra.mxu0 0.0
    %168 = vmatprep.subr.mxu0 0.0
    %169 = vmatpush1.msra.mxu0 0.0
    %170 = vmatprep.subr.mxu0 0.0
    %171 = vmatpush1.msra.mxu0 0.0
    %172 = vmatprep.subr.mxu0 0.0
    %173 = vmatpush1.msra.mxu0 0.0
    %174 = vmatprep.subr.mxu0 0.0
    %175 = vmatpush1.msra.mxu0 0.0
    %176 = vmatprep.subr.mxu0 0.0
    %177 = vmatpush1.msra.mxu0 0.0
    %178 = vmatprep.subr.mxu0 0.0
    %179 = vmatpush1.msra.mxu0 0.0
    %180 = vmatprep.subr.mxu0 0.0
    %181 = vmatpush1.msra.mxu0 0.0
    %182 = vmatprep.subr.mxu0 0.0
    %183 = vmatpush1.msra.mxu0 0.0
    %184 = vmatprep.subr.mxu0 0.0
    %185 = vmatpush1.msra.mxu0 0.0
    %186 = vmatprep.subr.mxu0 0.0
    %187 = vmatpush1.msra.mxu0 0.0
    %188 = vmatprep.subr.mxu0 0.0
    %189 = vmatpush1.msra.mxu0 0.0
    %190 = vmatprep.subr.mxu0 0.0
    %191 = vmatpush1.msra.mxu0 %v160
    %192 = vmatprep.subr.mxu0 0.0
    %193 = vmatpush1.msra.mxu0 %v146
    %194 = vmatprep.subr.mxu0 0.0
    %195 = vmatpush2.msra.mxu0 0.0
    %196 = vmatprep.subr.mxu0 0.0
    %197 = vmatpush2.msra.mxu0 0.0
    %198 = vmatprep.subr.mxu0 0.0
    %199 = vmatpush2.msra.mxu0 0.0
    %200 = vmatprep.subr.mxu0 0.0
    %201 = vmatpush2.msra.mxu0 0.0
    %202 = vmatprep.subr.mxu0 0.0
    %203 = vmatpush2.msra.mxu0 0.0
    %204 = vmatprep.subr.mxu0 0.0
    %205 = vmatpush2.msra.mxu0 0.0
    %206 = vmatprep.subr.mxu0 0.0
    %207 = vmatpush2.msra.mxu0 0.0
    %208 = vmatprep.subr.mxu0 0.0
    %209 = vmatpush2.msra.mxu0 0.0
    %210 = vmatprep.subr.mxu0 0.0
    %211 = vmatpush2.msra.mxu0 0.0
    %212 = vmatprep.subr.mxu0 0.0
    %213 = vmatpush2.msra.mxu0 0.0
    %214 = vmatprep.subr.mxu0 0.0
    %215 = vmatpush2.msra.mxu0 0.0
    %216 = vmatprep.subr.mxu0 0.0
    %217 = vmatpush2.msra.mxu0 0.0
    %218 = vmatprep.subr.mxu0 0.0
    %219 = vmatpush2.msra.mxu0 0.0
    %220 = vmatprep.subr.mxu0 0.0
    %221 = vmatpush2.msra.mxu0 0.0
    %222 = vmatprep.subr.mxu0 0.0
    %223 = vmatpush2.msra.mxu0 0.0
    %224 = vmatprep.subr.mxu0 0.0
    %225 = vmatpush2.msra.mxu0 0.0
    %226 = vmatprep.mubr.f32.mxu0 0.0
    %227 = vmatmul.mubr.f32.gmra.mxu0 %v150
    %v228 = vpop.f32.mrf.mxu0
    %v229 = vadd.f32 0.0, %v228
    %v230 = vpop.f32.mrf.mxu0
    %231 = vmatprep.mubr.f32.mxu0 0.0
    %232 = vmatmul.mubr.f32.gmra.mxu0 %v153
    %v233 = vpop.f32.mrf.mxu0
    %v234 = vadd.f32 0.0, %v233
    %v235 = vpop.f32.mrf.mxu0
    %236 = vmatprep.mubr.f32.mxu0 0.0
    %237 = vmatmul.mubr.f32.gmra.mxu0 %v156
    %v238 = vpop.f32.mrf.mxu0
    %v239 = vadd.f32 0.0, %v238
    %v240 = vpop.f32.mrf.mxu0
    %241 = vdwg.mxu0
    %v242 = vld [vmem:[#allocation2 + $0x90] sm:$0x1]
    %v243 = vsel %vm41, 1, 0
    %v244 = vsel %vm42, 1, 0
    %v245 = vsel %vm43, 1, 0
    %246 = vset.pattern.permute.xlu0 0
    %247 = vperm.xlu0 %246, %v243
    %v248 = vpop.permute.xlu0 %247
    %249 = vset.pattern.permute.xlu0 0
    %250 = vperm.xlu0 %249, %v244
    %v251 = vpop.permute.xlu0 %250
    %252 = vset.pattern.permute.xlu0 0
    %253 = vperm.xlu0 %252, %v245
    %v254 = vpop.permute.xlu0 %253
    %vm255 = vcmp.eq.s32.totalorder %v248, 1
    %vm256 = vcmp.eq.s32.totalorder %v251, 1
    %vm257 = vcmp.eq.s32.totalorder %v254, 1
    %v258 = vlaneseq
    %v259 = vshrl.u32 %v258, 7
    %v260 = vsub.s32 0, %v259
    %v261 = vrot.slane %v242, %v260
    %v262 = vsel %vm255, %v261, %v133
    %v263 = vsel %vm256, %v261, %v138
    %v264 = vsel %vm257, %v261, %v143
    %v265 = vadd.f32 %v262, %v229
    %v266 = vadd.f32 %v263, %v234
    %v267 = vadd.f32 %v264, %v239
    %v268 = vld [vmem:[#allocation2 + $0xb8] sm:$0x1]
    %v269 = vld [vmem:[#allocation2 + $0xc0] sm:$0x1]
    %v270 = vld [vmem:[#allocation2 + $0xc8] sm:$0xff]
    %v271 = vld [vmem:[#allocation2 + $0xd0] sm:$0xff]
    %v272 = vld [vmem:[#allocation2 + $0xd8] sm:$0xff]
    %v273 = vld [vmem:[#allocation2 + $0xe0] sm:$0xff]
    %v274 = vld [vmem:[#allocation2 + $0xe8] sm:$0xff]
    %v275 = vld [vmem:[#allocation2 + $0xf0] sm:$0xff]
    %v276 = vld [vmem:[#allocation2 + $0xf8] sm:$0xff]
    %v277 = vld [vmem:[#allocation2 + $0x100] sm:$0xff]
    %v278 = vld [vmem:[#allocation2 + $0x108] sm:$0x1]
    %v279 = vld [vmem:[#allocation2 + $0x110] sm:$0x1]
    %v280 = vld [vmem:[#allocation2 + $0x118] sm:$0x1]
    %v281 = vld [vmem:[#allocation2 + $0x120] sm:$0xff]
    %v282 = vld [vmem:[#allocation2 + $0x128] sm:$0xff]
    %v283 = vld [vmem:[#allocation2 + $0x130] sm:$0xff]
    %v284 = vld [vmem:[#allocation2 + $0x138] sm:$0xff]
    %v285 = vld [vmem:[#allocation2 + $0x140] sm:$0x1]
    %v286 = vld [vmem:[#allocation2 + $0x148] sm:$0xff]
    %v287 = vld [vmem:[#allocation2 + $0x150] sm:$0xf]
    %v288 = vld [vmem:[#allocation2 + $0x158] sm:$0x1]
    %vm289 = vcmask 261120
    %v290 = vsel %vm289, %v265, 0.0
    %291 = vadd.xlane.f32.xlu0 %v290
    %v292 = vpop.xlane.xlu0 %291
    %v293 = vsel %vm289, %v266, 0.0
    %294 = vadd.xlane.f32.xlu0 %v293
    %v295 = vpop.xlane.xlu0 %294
    %vm296 = vcmask 254976
    %v297 = vsel %vm296, %v267, 0.0
    %298 = vadd.xlane.f32.xlu0 %v297
    %v299 = vpop.xlane.xlu0 %298
    %v300 = vrcp.pop 32.0
    %v301 = vmul.f32 %v292, %v300
    %v302 = vmul.f32 %v295, %v300
    %v303 = vmul.f32 %v299, %v300
    %v304 = vsub.f32 %v265, %v301
    %v305 = vsub.f32 %v266, %v302
    %v306 = vsub.f32 %v267, %v303
    %v307 = vmul.f32 %v304, %v304
    %v308 = vmul.f32 %v305, %v305
    %v309 = vmul.f32 %v306, %v306
    %v310 = vsel %vm289, %v307, 0.0
    %311 = vadd.xlane.f32.xlu0 %v310
    %v312 = vpop.xlane.xlu0 %311
    %v313 = vsel %vm289, %v308, 0.0
    %314 = vadd.xlane.f32.xlu0 %v313
    %v315 = vpop.xlane.xlu0 %314
    %v316 = vsel %vm296, %v309, 0.0
    %317 = vadd.xlane.f32.xlu0 %v316
    %v318 = vpop.xlane.xlu0 %317
    %v319 = vmul.f32 %v312, %v300
    %v320 = vmul.f32 %v315, %v300
    %v321 = vmul.f32 %v318, %v300
    %v322 = vadd.f32 %v319, 1e-05
    %v323 = vadd.f32 %v320, 1e-05
    %v324 = vadd.f32 %v321, 1e-05
    %v325 = vrsqrt.pop %v322
    %v326 = vrsqrt.pop %v323
    %v327 = vrsqrt.pop %v324
    %v328 = vmul.f32 %v304, %v325
    %v329 = vmul.f32 %v305, %v326
    %v330 = vmul.f32 %v306, %v327
    %v331 = vlaneseq
    %v332 = vshrl.u32 %v331, 7
    %v333 = vsub.s32 0, %v332
    %v334 = vrot.slane %v268, %v333
    %v335 = vmul.f32 %v328, %v334
    %v336 = vmul.f32 %v329, %v334
    %v337 = vmul.f32 %v330, %v334
    %v338 = vlaneseq
    %v339 = vshrl.u32 %v338, 7
    %v340 = vsub.s32 0, %v339
    %v341 = vrot.slane %v269, %v340
    %v342 = vadd.f32 %v335, %v341
    %v343 = vadd.f32 %v336, %v341
    %v344 = vadd.f32 %v337, %v341
    %v345 = vlaneseq
    %v346 = vshrl.u32 %v345, 7
    %v347 = vsub.s32 0, %v346
    %v348 = vrot.slane %v44, %v347
    %v349 = vmul.f32 %v328, %v348
    %v350 = vmul.f32 %v329, %v348
    %v351 = vmul.f32 %v330, %v348
    %v352 = vlaneseq
    %v353 = vshrl.u32 %v352, 7
    %v354 = vsub.s32 0, %v353
    %v355 = vrot.slane %v45, %v354
    %v356 = vadd.f32 %v349, %v355
    %v357 = vadd.f32 %v350, %v355
    %v358 = vadd.f32 %v351, %v355
    %v360 = vsel %vm289, %v342, 0
    %v363 = vsel %vm289, %v343, 0
    %v366 = vsel %vm289, %v344, 0
    %368 = vmatprep.subr.mxu0 0.0
    %369 = vmatpush1.msra.mxu0 0.0
    %370 = vmatprep.subr.mxu0 0.0
    %371 = vmatpush1.msra.mxu0 0.0
    %372 = vmatprep.subr.mxu0 0.0
    %373 = vmatpush1.msra.mxu0 0.0
    %374 = vmatprep.subr.mxu0 0.0
    %375 = vmatpush1.msra.mxu0 0.0
    %376 = vmatprep.subr.mxu0 0.0
    %377 = vmatpush1.msra.mxu0 0.0
    %378 = vmatprep.subr.mxu0 0.0
    %379 = vmatpush1.msra.mxu0 0.0
    %380 = vmatprep.subr.mxu0 0.0
    %381 = vmatpush1.msra.mxu0 0.0
    %382 = vmatprep.subr.mxu0 0.0
    %383 = vmatpush1.msra.mxu0 0.0
    %384 = vmatprep.subr.mxu0 0.0
    %385 = vmatpush1.msra.mxu0 0.0
    %386 = vmatprep.subr.mxu0 0.0
    %387 = vmatpush1.msra.mxu0 0.0
    %388 = vmatprep.subr.mxu0 0.0
    %389 = vmatpush1.msra.mxu0 0.0
    %390 = vmatprep.subr.mxu0 0.0
    %391 = vmatpush1.msra.mxu0 0.0
    %392 = vmatprep.subr.mxu0 0.0
    %393 = vmatpush1.msra.mxu0 %v273
    %394 = vmatprep.subr.mxu0 0.0
    %395 = vmatpush1.msra.mxu0 %v272
    %396 = vmatprep.subr.mxu0 0.0
    %397 = vmatpush1.msra.mxu0 %v271
    %398 = vmatprep.subr.mxu0 0.0
    %399 = vmatpush1.msra.mxu0 %v270
    %400 = vmatprep.subr.mxu0 0.0
    %401 = vmatpush2.msra.mxu0 0.0
    %402 = vmatprep.subr.mxu0 0.0
    %403 = vmatpush2.msra.mxu0 0.0
    %404 = vmatprep.subr.mxu0 0.0
    %405 = vmatpush2.msra.mxu0 0.0
    %406 = vmatprep.subr.mxu0 0.0
    %407 = vmatpush2.msra.mxu0 0.0
    %408 = vmatprep.subr.mxu0 0.0
    %409 = vmatpush2.msra.mxu0 0.0
    %410 = vmatprep.subr.mxu0 0.0
    %411 = vmatpush2.msra.mxu0 0.0
    %412 = vmatprep.subr.mxu0 0.0
    %413 = vmatpush2.msra.mxu0 0.0
    %414 = vmatprep.subr.mxu0 0.0
    %415 = vmatpush2.msra.mxu0 0.0
    %416 = vmatprep.subr.mxu0 0.0
    %417 = vmatpush2.msra.mxu0 0.0
    %418 = vmatprep.subr.mxu0 0.0
    %419 = vmatpush2.msra.mxu0 0.0
    %420 = vmatprep.subr.mxu0 0.0
    %421 = vmatpush2.msra.mxu0 0.0
    %422 = vmatprep.subr.mxu0 0.0
    %423 = vmatpush2.msra.mxu0 0.0
    %424 = vmatprep.subr.mxu0 0.0
    %425 = vmatpush2.msra.mxu0 0.0
    %426 = vmatprep.subr.mxu0 0.0
    %427 = vmatpush2.msra.mxu0 0.0
    %428 = vmatprep.subr.mxu0 0.0
    %429 = vmatpush2.msra.mxu0 0.0
    %430 = vmatprep.subr.mxu0 0.0
    %431 = vmatpush2.msra.mxu0 0.0
    %432 = vmatprep.mubr.f32.mxu0 0.0
    %433 = vmatmul.mubr.f32.gmra.mxu0 %v360
    %v434 = vpop.f32.mrf.mxu0
    %v435 = vadd.f32 0.0, %v434
    %v436 = vpop.f32.mrf.mxu0
    %437 = vmatprep.mubr.f32.mxu0 0.0
    %438 = vmatmul.mubr.f32.gmra.mxu0 %v363
    %v439 = vpop.f32.mrf.mxu0
    %v440 = vadd.f32 0.0, %v439
    %v441 = vpop.f32.mrf.mxu0
    %442 = vmatprep.mubr.f32.mxu0 0.0
    %443 = vmatmul.mubr.f32.gmra.mxu0 %v366
    %v444 = vpop.f32.mrf.mxu0
    %v445 = vadd.f32 0.0, %v444
    %v446 = vpop.f32.mrf.mxu0
    %447 = vdwg.mxu0
    %vm448 = vcmask 146432
    %v450 = vsel %vm448, %v34, 0
    %v453 = vsel %vm448, %v35, 0
    %v456 = vsel %vm448, %v36, 0
    %vm458 = vcmask 1041408
    %v460 = vsel %vm458, %v445, 0
    %462 = vmatprep.subr.mxu0 0.0
    %463 = vmatpush1.msra.mxu0 0.0
    %464 = vmatprep.subr.mxu0 0.0
    %465 = vmatpush1.msra.mxu0 0.0
    %466 = vmatprep.subr.mxu0 0.0
    %467 = vmatpush1.msra.mxu0 0.0
    %468 = vmatprep.subr.mxu0 0.0
    %469 = vmatpush1.msra.mxu0 0.0
    %470 = vmatprep.subr.mxu0 0.0
    %471 = vmatpush1.msra.mxu0 0.0
    %472 = vmatprep.subr.mxu0 0.0
    %473 = vmatpush1.msra.mxu0 0.0
    %474 = vmatprep.subr.mxu0 0.0
    %475 = vmatpush1.msra.mxu0 0.0
    %476 = vmatprep.subr.mxu0 0.0
    %477 = vmatpush1.msra.mxu0 0.0
    %478 = vmatprep.subr.mxu0 0.0
    %479 = vmatpush1.msra.mxu0 0.0
    %480 = vmatprep.subr.mxu0 0.0
    %481 = vmatpush1.msra.mxu0 0.0
    %482 = vmatprep.subr.mxu0 0.0
    %483 = vmatpush1.msra.mxu0 0.0
    %484 = vmatprep.subr.mxu0 0.0
    %485 = vmatpush1.msra.mxu0 0.0
    %486 = vmatprep.subr.mxu0 0.0
    %487 = vmatpush1.msra.mxu0 0.0
    %488 = vmatprep.subr.mxu0 0.0
    %489 = vmatpush1.msra.mxu0 %v460
    %490 = vmatprep.subr.mxu0 0.0
    %491 = vmatpush1.msra.mxu0 %v440
    %492 = vmatprep.subr.mxu0 0.0
    %493 = vmatpush1.msra.mxu0 %v435
    %494 = vmatprep.subr.mxu0 0.0
    %495 = vmatpush2.msra.mxu0 0.0
    %496 = vmatprep.subr.mxu0 0.0
    %497 = vmatpush2.msra.mxu0 0.0
    %498 = vmatprep.subr.mxu0 0.0
    %499 = vmatpush2.msra.mxu0 0.0
    %500 = vmatprep.subr.mxu0 0.0
    %501 = vmatpush2.msra.mxu0 0.0
    %502 = vmatprep.subr.mxu0 0.0
    %503 = vmatpush2.msra.mxu0 0.0
    %504 = vmatprep.subr.mxu0 0.0
    %505 = vmatpush2.msra.mxu0 0.0
    %506 = vmatprep.subr.mxu0 0.0
    %507 = vmatpush2.msra.mxu0 0.0
    %508 = vmatprep.subr.mxu0 0.0
    %509 = vmatpush2.msra.mxu0 0.0
    %510 = vmatprep.subr.mxu0 0.0
    %511 = vmatpush2.msra.mxu0 0.0
    %512 = vmatprep.subr.mxu0 0.0
    %513 = vmatpush2.msra.mxu0 0.0
    %514 = vmatprep.subr.mxu0 0.0
    %515 = vmatpush2.msra.mxu0 0.0
    %516 = vmatprep.subr.mxu0 0.0
    %517 = vmatpush2.msra.mxu0 0.0
    %518 = vmatprep.subr.mxu0 0.0
    %519 = vmatpush2.msra.mxu0 0.0
    %520 = vmatprep.subr.mxu0 0.0
    %521 = vmatpush2.msra.mxu0 0.0
    %522 = vmatprep.subr.mxu0 0.0
    %523 = vmatpush2.msra.mxu0 0.0
    %524 = vmatprep.subr.mxu0 0.0
    %525 = vmatpush2.msra.mxu0 0.0
    %526 = vmatprep.mubr.f32.mxu0 0.0
    %527 = vmatmul.mubr.f32.gmra.mxu0 %v450
    %v528 = vpop.f32.mrf.mxu0
    %v529 = vadd.f32 0.0, %v528
    %v530 = vpop.f32.mrf.mxu0
    %531 = vmatprep.mubr.f32.mxu0 0.0
    %532 = vmatmul.mubr.f32.gmra.mxu0 %v453
    %v533 = vpop.f32.mrf.mxu0
    %v534 = vadd.f32 0.0, %v533
    %v535 = vpop.f32.mrf.mxu0
    %536 = vmatprep.mubr.f32.mxu0 0.0
    %537 = vmatmul.mubr.f32.gmra.mxu0 %v456
    %v538 = vpop.f32.mrf.mxu0
    %v539 = vadd.f32 0.0, %v538
    %v540 = vpop.f32.mrf.mxu0
    %541 = vdwg.mxu0
    %544 = vrot.lane.b32.xlu0 %v435, 96
    %v545 = vpop.permute.xlu0 %544
    %546 = vrot.lane.b32.xlu0 %v440, 96
    %v547 = vpop.permute.xlu0 %546
    %548 = vrot.lane.b32.xlu0 %v445, 96
    %v549 = vpop.permute.xlu0 %548
    %v553 = vmul.f32 %v529, %v545
    %v554 = vmul.f32 %v534, %v547
    %v555 = vmul.f32 %v539, %v549
    %v557 = vsel %vm289, %v553, 0
    %v560 = vsel %vm289, %v554, 0
    %v563 = vsel %vm289, %v555, 0
    %565 = vmatprep.subr.mxu0 0.0
    %566 = vmatpush1.msra.mxu0 0.0
    %567 = vmatprep.subr.mxu0 0.0
    %568 = vmatpush1.msra.mxu0 0.0
    %569 = vmatprep.subr.mxu0 0.0
    %570 = vmatpush1.msra.mxu0 0.0
    %571 = vmatprep.subr.mxu0 0.0
    %572 = vmatpush1.msra.mxu0 0.0
    %573 = vmatprep.subr.mxu0 0.0
    %574 = vmatpush1.msra.mxu0 0.0
    %575 = vmatprep.subr.mxu0 0.0
    %576 = vmatpush1.msra.mxu0 0.0
    %577 = vmatprep.subr.mxu0 0.0
    %578 = vmatpush1.msra.mxu0 0.0
    %579 = vmatprep.subr.mxu0 0.0
    %580 = vmatpush1.msra.mxu0 0.0
    %581 = vmatprep.subr.mxu0 0.0
    %582 = vmatpush1.msra.mxu0 0.0
    %583 = vmatprep.subr.mxu0 0.0
    %584 = vmatpush1.msra.mxu0 0.0
    %585 = vmatprep.subr.mxu0 0.0
    %586 = vmatpush1.msra.mxu0 0.0
    %587 = vmatprep.subr.mxu0 0.0
    %588 = vmatpush1.msra.mxu0 0.0
    %589 = vmatprep.subr.mxu0 0.0
    %590 = vmatpush1.msra.mxu0 %v29
    %591 = vmatprep.subr.mxu0 0.0
    %592 = vmatpush1.msra.mxu0 %v28
    %593 = vmatprep.subr.mxu0 0.0
    %594 = vmatpush1.msra.mxu0 %v27
    %595 = vmatprep.subr.mxu0 0.0
    %596 = vmatpush1.msra.mxu0 %v26
    %597 = vmatprep.subr.mxu0 0.0
    %598 = vmatpush2.msra.mxu0 0.0
    %599 = vmatprep.subr.mxu0 0.0
    %600 = vmatpush2.msra.mxu0 0.0
    %601 = vmatprep.subr.mxu0 0.0
    %602 = vmatpush2.msra.mxu0 0.0
    %603 = vmatprep.subr.mxu0 0.0
    %604 = vmatpush2.msra.mxu0 0.0
    %605 = vmatprep.subr.mxu0 0.0
    %606 = vmatpush2.msra.mxu0 0.0
    %607 = vmatprep.subr.mxu0 0.0
    %608 = vmatpush2.msra.mxu0 0.0
    %609 = vmatprep.subr.mxu0 0.0
    %610 = vmatpush2.msra.mxu0 0.0
    %611 = vmatprep.subr.mxu0 0.0
    %612 = vmatpush2.msra.mxu0 0.0
    %613 = vmatprep.subr.mxu0 0.0
    %614 = vmatpush2.msra.mxu0 0.0
    %615 = vmatprep.subr.mxu0 0.0
    %616 = vmatpush2.msra.mxu0 0.0
    %617 = vmatprep.subr.mxu0 0.0
    %618 = vmatpush2.msra.mxu0 0.0
    %619 = vmatprep.subr.mxu0 0.0
    %620 = vmatpush2.msra.mxu0 0.0
    %621 = vmatprep.subr.mxu0 0.0
    %622 = vmatpush2.msra.mxu0 0.0
    %623 = vmatprep.subr.mxu0 0.0
    %624 = vmatpush2.msra.mxu0 0.0
    %625 = vmatprep.subr.mxu0 0.0
    %626 = vmatpush2.msra.mxu0 0.0
    %627 = vmatprep.subr.mxu0 0.0
    %628 = vmatpush2.msra.mxu0 0.0
    %629 = vmatprep.mubr.f32.mxu0 0.0
    %630 = vmatmul.mubr.f32.gmra.mxu0 %v557
    %v631 = vpop.f32.mrf.mxu0
    %v632 = vadd.f32 0.0, %v631
    %v633 = vpop.f32.mrf.mxu0
    %634 = vmatprep.mubr.f32.mxu0 0.0
    %635 = vmatmul.mubr.f32.gmra.mxu0 %v560
    %v636 = vpop.f32.mrf.mxu0
    %v637 = vadd.f32 0.0, %v636
    %v638 = vpop.f32.mrf.mxu0
    %639 = vmatprep.mubr.f32.mxu0 0.0
    %640 = vmatmul.mubr.f32.gmra.mxu0 %v563
    %v641 = vpop.f32.mrf.mxu0
    %v642 = vadd.f32 0.0, %v641
    %v643 = vpop.f32.mrf.mxu0
    %644 = vdwg.mxu0
    %vm645 = vcmask 64512
    %v646 = vsel %vm645, %v632, -inf
    %v647 = vsel %vm645, %v637, -inf
    %vm648 = vcmask 58368
    %v649 = vsel %vm648, %v642, -inf
    %v650 = vmax.f32 %v646, %v647
    %v651 = vmax.f32 %v650, %v649
    %v652 = vrot.slane %v651, 4
    %v653 = vmax.f32 %v651, %v652
    %v654 = vrot.slane %v653, 2
    %v655 = vmax.f32 %v653, %v654
    %v656 = vrot.slane %v655, 1
    %v657 = vmax.f32 %v655, %v656
    %v658 = vsub.f32 %v632, %v657
    %v659 = vsub.f32 %v637, %v657
    %v660 = vsub.f32 %v642, %v657
    %v661 = vmul.f32 %v658, 1.442695
    %v662 = vpow.pop %v661
    %v663 = vmul.f32 %v659, 1.442695
    %v664 = vpow.pop %v663
    %v665 = vmul.f32 %v660, 1.442695
    %v666 = vpow.pop %v665
    %v668 = vsel %vm448, %v31, 0
    %v671 = vsel %vm448, %v32, 0
    %v674 = vsel %vm448, %v33, 0
    %v677 = vsel %vm458, %v666, 0
    %679 = vmatprep.subr.mxu0 0.0
    %680 = vmatpush1.msra.mxu0 0.0
    %681 = vmatprep.subr.mxu0 0.0
    %682 = vmatpush1.msra.mxu0 0.0
    %683 = vmatprep.subr.mxu0 0.0
    %684 = vmatpush1.msra.mxu0 0.0
    %685 = vmatprep.subr.mxu0 0.0
    %686 = vmatpush1.msra.mxu0 0.0
    %687 = vmatprep.subr.mxu0 0.0
    %688 = vmatpush1.msra.mxu0 0.0
    %689 = vmatprep.subr.mxu0 0.0
    %690 = vmatpush1.msra.mxu0 0.0
    %691 = vmatprep.subr.mxu0 0.0
    %692 = vmatpush1.msra.mxu0 0.0
    %693 = vmatprep.subr.mxu0 0.0
    %694 = vmatpush1.msra.mxu0 0.0
    %695 = vmatprep.subr.mxu0 0.0
    %696 = vmatpush1.msra.mxu0 0.0
    %697 = vmatprep.subr.mxu0 0.0
    %698 = vmatpush1.msra.mxu0 0.0
    %699 = vmatprep.subr.mxu0 0.0
    %700 = vmatpush1.msra.mxu0 0.0
    %701 = vmatprep.subr.mxu0 0.0
    %702 = vmatpush1.msra.mxu0 0.0
    %703 = vmatprep.subr.mxu0 0.0
    %704 = vmatpush1.msra.mxu0 0.0
    %705 = vmatprep.subr.mxu0 0.0
    %706 = vmatpush1.msra.mxu0 %v677
    %707 = vmatprep.subr.mxu0 0.0
    %708 = vmatpush1.msra.mxu0 %v664
    %709 = vmatprep.subr.mxu0 0.0
    %710 = vmatpush1.msra.mxu0 %v662
    %711 = vmatprep.subr.mxu0 0.0
    %712 = vmatpush2.msra.mxu0 0.0
    %713 = vmatprep.subr.mxu0 0.0
    %714 = vmatpush2.msra.mxu0 0.0
    %715 = vmatprep.subr.mxu0 0.0
    %716 = vmatpush2.msra.mxu0 0.0
    %717 = vmatprep.subr.mxu0 0.0
    %718 = vmatpush2.msra.mxu0 0.0
    %719 = vmatprep.subr.mxu0 0.0
    %720 = vmatpush2.msra.mxu0 0.0
    %721 = vmatprep.subr.mxu0 0.0
    %722 = vmatpush2.msra.mxu0 0.0
    %723 = vmatprep.subr.mxu0 0.0
    %724 = vmatpush2.msra.mxu0 0.0
    %725 = vmatprep.subr.mxu0 0.0
    %726 = vmatpush2.msra.mxu0 0.0
    %727 = vmatprep.subr.mxu0 0.0
    %728 = vmatpush2.msra.mxu0 0.0
    %729 = vmatprep.subr.mxu0 0.0
    %730 = vmatpush2.msra.mxu0 0.0
    %731 = vmatprep.subr.mxu0 0.0
    %732 = vmatpush2.msra.mxu0 0.0
    %733 = vmatprep.subr.mxu0 0.0
    %734 = vmatpush2.msra.mxu0 0.0
    %735 = vmatprep.subr.mxu0 0.0
    %736 = vmatpush2.msra.mxu0 0.0
    %737 = vmatprep.subr.mxu0 0.0
    %738 = vmatpush2.msra.mxu0 0.0
    %739 = vmatprep.subr.mxu0 0.0
    %740 = vmatpush2.msra.mxu0 0.0
    %741 = vmatprep.subr.mxu0 0.0
    %742 = vmatpush2.msra.mxu0 0.0
    %743 = vmatprep.mubr.f32.mxu0 0.0
    %744 = vmatmul.mubr.f32.gmra.mxu0 %v668
    %v745 = vpop.f32.mrf.mxu0
    %v746 = vadd.f32 0.0, %v745
    %v747 = vpop.f32.mrf.mxu0
    %748 = vmatprep.mubr.f32.mxu0 0.0
    %749 = vmatmul.mubr.f32.gmra.mxu0 %v671
    %v750 = vpop.f32.mrf.mxu0
    %v751 = vadd.f32 0.0, %v750
    %v752 = vpop.f32.mrf.mxu0
    %753 = vmatprep.mubr.f32.mxu0 0.0
    %754 = vmatmul.mubr.f32.gmra.mxu0 %v674
    %v755 = vpop.f32.mrf.mxu0
    %v756 = vadd.f32 0.0, %v755
    %v757 = vpop.f32.mrf.mxu0
    %758 = vdwg.mxu0
    %v759 = vrcp.pop %v746
    %v760 = vrcp.pop %v751
    %v761 = vrcp.pop %v756
    %v762 = vmul.f32 %v662, %v759
    %v763 = vmul.f32 %v664, %v760
    %v764 = vmul.f32 %v666, %v761
    %v766 = vsel %vm645, %v762, 0
    %v769 = vsel %vm645, %v763, 0
    %v772 = vsel %vm645, %v764, 0
    %774 = vmatprep.subr.mxu0 0.0
    %775 = vmatpush1.msra.mxu0 0.0
    %776 = vmatprep.subr.mxu0 0.0
    %777 = vmatpush1.msra.mxu0 0.0
    %778 = vmatprep.subr.mxu0 0.0
    %779 = vmatpush1.msra.mxu0 0.0
    %780 = vmatprep.subr.mxu0 0.0
    %781 = vmatpush1.msra.mxu0 0.0
    %782 = vmatprep.subr.mxu0 0.0
    %783 = vmatpush1.msra.mxu0 0.0
    %784 = vmatprep.subr.mxu0 0.0
    %785 = vmatpush1.msra.mxu0 0.0
    %786 = vmatprep.subr.mxu0 0.0
    %787 = vmatpush1.msra.mxu0 0.0
    %788 = vmatprep.subr.mxu0 0.0
    %789 = vmatpush1.msra.mxu0 0.0
    %790 = vmatprep.subr.mxu0 0.0
    %791 = vmatpush1.msra.mxu0 0.0
    %792 = vmatprep.subr.mxu0 0.0
    %793 = vmatpush1.msra.mxu0 0.0
    %794 = vmatprep.subr.mxu0 0.0
    %795 = vmatpush1.msra.mxu0 0.0
    %796 = vmatprep.subr.mxu0 0.0
    %797 = vmatpush1.msra.mxu0 0.0
    %798 = vmatprep.subr.mxu0 0.0
    %799 = vmatpush1.msra.mxu0 0.0
    %800 = vmatprep.subr.mxu0 0.0
    %801 = vmatpush1.msra.mxu0 0.0
    %802 = vmatprep.subr.mxu0 0.0
    %803 = vmatpush1.msra.mxu0 0.0
    %804 = vmatprep.subr.mxu0 0.0
    %805 = vmatpush1.msra.mxu0 %v30
    %806 = vmatprep.subr.mxu0 0.0
    %807 = vmatpush2.msra.mxu0 0.0
    %808 = vmatprep.subr.mxu0 0.0
    %809 = vmatpush2.msra.mxu0 0.0
    %810 = vmatprep.subr.mxu0 0.0
    %811 = vmatpush2.msra.mxu0 0.0
    %812 = vmatprep.subr.mxu0 0.0
    %813 = vmatpush2.msra.mxu0 0.0
    %814 = vmatprep.subr.mxu0 0.0
    %815 = vmatpush2.msra.mxu0 0.0
    %816 = vmatprep.subr.mxu0 0.0
    %817 = vmatpush2.msra.mxu0 0.0
    %818 = vmatprep.subr.mxu0 0.0
    %819 = vmatpush2.msra.mxu0 0.0
    %820 = vmatprep.subr.mxu0 0.0
    %821 = vmatpush2.msra.mxu0 0.0
    %822 = vmatprep.subr.mxu0 0.0
    %823 = vmatpush2.msra.mxu0 0.0
    %824 = vmatprep.subr.mxu0 0.0
    %825 = vmatpush2.msra.mxu0 0.0
    %826 = vmatprep.subr.mxu0 0.0
    %827 = vmatpush2.msra.mxu0 0.0
    %828 = vmatprep.subr.mxu0 0.0
    %829 = vmatpush2.msra.mxu0 0.0
    %830 = vmatprep.subr.mxu0 0.0
    %831 = vmatpush2.msra.mxu0 0.0
    %832 = vmatprep.subr.mxu0 0.0
    %833 = vmatpush2.msra.mxu0 0.0
    %834 = vmatprep.subr.mxu0 0.0
    %835 = vmatpush2.msra.mxu0 0.0
    %836 = vmatprep.subr.mxu0 0.0
    %837 = vmatpush2.msra.mxu0 0.0
    %838 = vmatprep.mubr.f32.mxu0 0.0
    %839 = vmatmul.mubr.f32.gmra.mxu0 %v766
    %v840 = vpop.f32.mrf.mxu0
    %v841 = vadd.f32 0.0, %v840
    %v842 = vpop.f32.mrf.mxu0
    %843 = vmatprep.mubr.f32.mxu0 0.0
    %844 = vmatmul.mubr.f32.gmra.mxu0 %v769
    %v845 = vpop.f32.mrf.mxu0
    %v846 = vadd.f32 0.0, %v845
    %v847 = vpop.f32.mrf.mxu0
    %848 = vmatprep.mubr.f32.mxu0 0.0
    %849 = vmatmul.mubr.f32.gmra.mxu0 %v772
    %v850 = vpop.f32.mrf.mxu0
    %v851 = vadd.f32 0.0, %v850
    %v852 = vpop.f32.mrf.mxu0
    %853 = vdwg.mxu0
    %854 = vrot.lane.b32.xlu0 %v435, 64
    %v855 = vpop.permute.xlu0 %854
    %856 = vrot.lane.b32.xlu0 %v440, 64
    %v857 = vpop.permute.xlu0 %856
    %858 = vrot.lane.b32.xlu0 %v445, 64
    %v859 = vpop.permute.xlu0 %858
    %v863 = vmul.f32 %v841, %v855
    %v864 = vmul.f32 %v846, %v857
    %v865 = vmul.f32 %v851, %v859
    %v867 = vsel %vm458, %v865, 0
    %869 = vmatprep.subr.mxu0 0.0
    %870 = vmatpush1.msra.mxu0 0.0
    %871 = vmatprep.subr.mxu0 0.0
    %872 = vmatpush1.msra.mxu0 0.0
    %873 = vmatprep.subr.mxu0 0.0
    %874 = vmatpush1.msra.mxu0 0.0
    %875 = vmatprep.subr.mxu0 0.0
    %876 = vmatpush1.msra.mxu0 0.0
    %877 = vmatprep.subr.mxu0 0.0
    %878 = vmatpush1.msra.mxu0 0.0
    %879 = vmatprep.subr.mxu0 0.0
    %880 = vmatpush1.msra.mxu0 0.0
    %881 = vmatprep.subr.mxu0 0.0
    %882 = vmatpush1.msra.mxu0 0.0
    %883 = vmatprep.subr.mxu0 0.0
    %884 = vmatpush1.msra.mxu0 0.0
    %885 = vmatprep.subr.mxu0 0.0
    %886 = vmatpush1.msra.mxu0 0.0
    %887 = vmatprep.subr.mxu0 0.0
    %888 = vmatpush1.msra.mxu0 0.0
    %889 = vmatprep.subr.mxu0 0.0
    %890 = vmatpush1.msra.mxu0 0.0
    %891 = vmatprep.subr.mxu0 0.0
    %892 = vmatpush1.msra.mxu0 0.0
    %893 = vmatprep.subr.mxu0 0.0
    %894 = vmatpush1.msra.mxu0 0.0
    %895 = vmatprep.subr.mxu0 0.0
    %896 = vmatpush1.msra.mxu0 %v867
    %897 = vmatprep.subr.mxu0 0.0
    %898 = vmatpush1.msra.mxu0 %v864
    %899 = vmatprep.subr.mxu0 0.0
    %900 = vmatpush1.msra.mxu0 %v863
    %901 = vmatprep.subr.mxu0 0.0
    %902 = vmatpush2.msra.mxu0 0.0
    %903 = vmatprep.subr.mxu0 0.0
    %904 = vmatpush2.msra.mxu0 0.0
    %905 = vmatprep.subr.mxu0 0.0
    %906 = vmatpush2.msra.mxu0 0.0
    %907 = vmatprep.subr.mxu0 0.0
    %908 = vmatpush2.msra.mxu0 0.0
    %909 = vmatprep.subr.mxu0 0.0
    %910 = vmatpush2.msra.mxu0 0.0
    %911 = vmatprep.subr.mxu0 0.0
    %912 = vmatpush2.msra.mxu0 0.0
    %913 = vmatprep.subr.mxu0 0.0
    %914 = vmatpush2.msra.mxu0 0.0
    %915 = vmatprep.subr.mxu0 0.0
    %916 = vmatpush2.msra.mxu0 0.0
    %917 = vmatprep.subr.mxu0 0.0
    %918 = vmatpush2.msra.mxu0 0.0
    %919 = vmatprep.subr.mxu0 0.0
    %920 = vmatpush2.msra.mxu0 0.0
    %921 = vmatprep.subr.mxu0 0.0
    %922 = vmatpush2.msra.mxu0 0.0
    %923 = vmatprep.subr.mxu0 0.0
    %924 = vmatpush2.msra.mxu0 0.0
    %925 = vmatprep.subr.mxu0 0.0
    %926 = vmatpush2.msra.mxu0 0.0
    %927 = vmatprep.subr.mxu0 0.0
    %928 = vmatpush2.msra.mxu0 0.0
    %929 = vmatprep.subr.mxu0 0.0
    %930 = vmatpush2.msra.mxu0 0.0
    %931 = vmatprep.subr.mxu0 0.0
    %932 = vmatpush2.msra.mxu0 0.0
    %933 = vmatprep.mubr.f32.mxu0 0.0
    %934 = vmatmul.mubr.f32.gmra.mxu0 %v668
    %v935 = vpop.f32.mrf.mxu0
    %v936 = vadd.f32 0.0, %v935
    %v937 = vpop.f32.mrf.mxu0
    %938 = vmatprep.mubr.f32.mxu0 0.0
    %939 = vmatmul.mubr.f32.gmra.mxu0 %v671
    %v940 = vpop.f32.mrf.mxu0
    %v941 = vadd.f32 0.0, %v940
    %v942 = vpop.f32.mrf.mxu0
    %943 = vmatprep.mubr.f32.mxu0 0.0
    %944 = vmatmul.mubr.f32.gmra.mxu0 %v674
    %v945 = vpop.f32.mrf.mxu0
    %v946 = vadd.f32 0.0, %v945
    %v947 = vpop.f32.mrf.mxu0
    %948 = vdwg.mxu0
    %v949 = vlaneseq
    %v950 = vshrl.u32 %v949, 7
    %v951 = vsub.s32 0, %v950
    %v952 = vrot.slane %v278, %v951
    %v954 = vsel %vm289, %v936, 0
    %v957 = vsel %vm289, %v941, 0
    %v960 = vsel %vm289, %v946, 0
    %962 = vmatprep.subr.mxu0 0.0
    %963 = vmatpush1.msra.mxu0 0.0
    %964 = vmatprep.subr.mxu0 0.0
    %965 = vmatpush1.msra.mxu0 0.0
    %966 = vmatprep.subr.mxu0 0.0
    %967 = vmatpush1.msra.mxu0 0.0
    %968 = vmatprep.subr.mxu0 0.0
    %969 = vmatpush1.msra.mxu0 0.0
    %970 = vmatprep.subr.mxu0 0.0
    %971 = vmatpush1.msra.mxu0 0.0
    %972 = vmatprep.subr.mxu0 0.0
    %973 = vmatpush1.msra.mxu0 0.0
    %974 = vmatprep.subr.mxu0 0.0
    %975 = vmatpush1.msra.mxu0 0.0
    %976 = vmatprep.subr.mxu0 0.0
    %977 = vmatpush1.msra.mxu0 0.0
    %978 = vmatprep.subr.mxu0 0.0
    %979 = vmatpush1.msra.mxu0 0.0
    %980 = vmatprep.subr.mxu0 0.0
    %981 = vmatpush1.msra.mxu0 0.0
    %982 = vmatprep.subr.mxu0 0.0
    %983 = vmatpush1.msra.mxu0 0.0
    %984 = vmatprep.subr.mxu0 0.0
    %985 = vmatpush1.msra.mxu0 0.0
    %986 = vmatprep.subr.mxu0 0.0
    %987 = vmatpush1.msra.mxu0 %v277
    %988 = vmatprep.subr.mxu0 0.0
    %989 = vmatpush1.msra.mxu0 %v276
    %990 = vmatprep.subr.mxu0 0.0
    %991 = vmatpush1.msra.mxu0 %v275
    %992 = vmatprep.subr.mxu0 0.0
    %993 = vmatpush1.msra.mxu0 %v274
    %994 = vmatprep.subr.mxu0 0.0
    %995 = vmatpush2.msra.mxu0 0.0
    %996 = vmatprep.subr.mxu0 0.0
    %997 = vmatpush2.msra.mxu0 0.0
    %998 = vmatprep.subr.mxu0 0.0
    %999 = vmatpush2.msra.mxu0 0.0
    %1000 = vmatprep.subr.mxu0 0.0
    %1001 = vmatpush2.msra.mxu0 0.0
    %1002 = vmatprep.subr.mxu0 0.0
    %1003 = vmatpush2.msra.mxu0 0.0
    %1004 = vmatprep.subr.mxu0 0.0
    %1005 = vmatpush2.msra.mxu0 0.0
    %1006 = vmatprep.subr.mxu0 0.0
    %1007 = vmatpush2.msra.mxu0 0.0
    %1008 = vmatprep.subr.mxu0 0.0
    %1009 = vmatpush2.msra.mxu0 0.0
    %1010 = vmatprep.subr.mxu0 0.0
    %1011 = vmatpush2.msra.mxu0 0.0
    %1012 = vmatprep.subr.mxu0 0.0
    %1013 = vmatpush2.msra.mxu0 0.0
    %1014 = vmatprep.subr.mxu0 0.0
    %1015 = vmatpush2.msra.mxu0 0.0
    %1016 = vmatprep.subr.mxu0 0.0
    %1017 = vmatpush2.msra.mxu0 0.0
    %1018 = vmatprep.subr.mxu0 0.0
    %1019 = vmatpush2.msra.mxu0 0.0
    %1020 = vmatprep.subr.mxu0 0.0
    %1021 = vmatpush2.msra.mxu0 0.0
    %1022 = vmatprep.subr.mxu0 0.0
    %1023 = vmatpush2.msra.mxu0 0.0
    %1024 = vmatprep.subr.mxu0 0.0
    %1025 = vmatpush2.msra.mxu0 0.0
    %1026 = vmatprep.mubr.f32.mxu0 0.0
    %1027 = vmatmul.mubr.f32.gmra.mxu0 %v954
    %v1028 = vpop.f32.mrf.mxu0
    %v1029 = vadd.f32 %v952, %v1028
    %v1030 = vpop.f32.mrf.mxu0
    %1031 = vmatprep.mubr.f32.mxu0 0.0
    %1032 = vmatmul.mubr.f32.gmra.mxu0 %v957
    %v1033 = vpop.f32.mrf.mxu0
    %v1034 = vadd.f32 %v952, %v1033
    %v1035 = vpop.f32.mrf.mxu0
    %1036 = vmatprep.mubr.f32.mxu0 0.0
    %1037 = vmatmul.mubr.f32.gmra.mxu0 %v960
    %v1038 = vpop.f32.mrf.mxu0
    %v1039 = vadd.f32 %v952, %v1038
    %v1040 = vpop.f32.mrf.mxu0
    %1041 = vdwg.mxu0
    %v1042 = vadd.f32 %v342, %v1029
    %v1043 = vadd.f32 %v343, %v1034
    %v1044 = vadd.f32 %v344, %v1039
    %v1045 = vsel %vm255, %v1042, %v356
    %v1046 = vsel %vm256, %v1043, %v357
    %v1047 = vsel %vm257, %v1044, %v358
    %v1048 = vsel %vm289, %v1045, 0.0
    %1049 = vadd.xlane.f32.xlu0 %v1048
    %v1050 = vpop.xlane.xlu0 %1049
    %v1051 = vsel %vm289, %v1046, 0.0
    %1052 = vadd.xlane.f32.xlu0 %v1051
    %v1053 = vpop.xlane.xlu0 %1052
    %v1054 = vsel %vm296, %v1047, 0.0
    %1055 = vadd.xlane.f32.xlu0 %v1054
    %v1056 = vpop.xlane.xlu0 %1055
    %v1057 = vmul.f32 %v1050, %v300
    %v1058 = vmul.f32 %v1053, %v300
    %v1059 = vmul.f32 %v1056, %v300
    %v1060 = vsub.f32 %v1045, %v1057
    %v1061 = vsub.f32 %v1046, %v1058
    %v1062 = vsub.f32 %v1047, %v1059
    %v1063 = vmul.f32 %v1060, %v1060
    %v1064 = vmul.f32 %v1061, %v1061
    %v1065 = vmul.f32 %v1062, %v1062
    %v1066 = vsel %vm289, %v1063, 0.0
    %1067 = vadd.xlane.f32.xlu0 %v1066
    %v1068 = vpop.xlane.xlu0 %1067
    %v1069 = vsel %vm289, %v1064, 0.0
    %1070 = vadd.xlane.f32.xlu0 %v1069
    %v1071 = vpop.xlane.xlu0 %1070
    %v1072 = vsel %vm296, %v1065, 0.0
    %1073 = vadd.xlane.f32.xlu0 %v1072
    %v1074 = vpop.xlane.xlu0 %1073
    %v1075 = vmul.f32 %v1068, %v300
    %v1076 = vmul.f32 %v1071, %v300
    %v1077 = vmul.f32 %v1074, %v300
    %v1078 = vadd.f32 %v1075, 1e-05
    %v1079 = vadd.f32 %v1076, 1e-05
    %v1080 = vadd.f32 %v1077, 1e-05
    %v1081 = vrsqrt.pop %v1078
    %v1082 = vrsqrt.pop %v1079
    %v1083 = vrsqrt.pop %v1080
    %v1084 = vmul.f32 %v1060, %v1081
    %v1085 = vmul.f32 %v1061, %v1082
    %v1086 = vmul.f32 %v1062, %v1083
    %v1087 = vlaneseq
    %v1088 = vshrl.u32 %v1087, 7
    %v1089 = vsub.s32 0, %v1088
    %v1090 = vrot.slane %v279, %v1089
    %v1091 = vmul.f32 %v1084, %v1090
    %v1092 = vmul.f32 %v1085, %v1090
    %v1093 = vmul.f32 %v1086, %v1090
    %v1094 = vlaneseq
    %v1095 = vshrl.u32 %v1094, 7
    %v1096 = vsub.s32 0, %v1095
    %v1097 = vrot.slane %v280, %v1096
    %v1098 = vadd.f32 %v1091, %v1097
    %v1099 = vadd.f32 %v1092, %v1097
    %v1100 = vadd.f32 %v1093, %v1097
    %v1101 = vlaneseq
    %v1102 = vshrl.u32 %v1101, 7
    %v1103 = vsub.s32 0, %v1102
    %v1104 = vrot.slane %v285, %v1103
    %v1106 = vsel %vm289, %v1098, 0
    %v1109 = vsel %vm289, %v1099, 0
    %v1112 = vsel %vm289, %v1100, 0
    %1114 = vmatprep.subr.mxu0 0.0
    %1115 = vmatpush1.msra.mxu0 0.0
    %1116 = vmatprep.subr.mxu0 0.0
    %1117 = vmatpush1.msra.mxu0 0.0
    %1118 = vmatprep.subr.mxu0 0.0
    %1119 = vmatpush1.msra.mxu0 0.0
    %1120 = vmatprep.subr.mxu0 0.0
    %1121 = vmatpush1.msra.mxu0 0.0
    %1122 = vmatprep.subr.mxu0 0.0
    %1123 = vmatpush1.msra.mxu0 0.0
    %1124 = vmatprep.subr.mxu0 0.0
    %1125 = vmatpush1.msra.mxu0 0.0
    %1126 = vmatprep.subr.mxu0 0.0
    %1127 = vmatpush1.msra.mxu0 0.0
    %1128 = vmatprep.subr.mxu0 0.0
    %1129 = vmatpush1.msra.mxu0 0.0
    %1130 = vmatprep.subr.mxu0 0.0
    %1131 = vmatpush1.msra.mxu0 0.0
    %1132 = vmatprep.subr.mxu0 0.0
    %1133 = vmatpush1.msra.mxu0 0.0
    %1134 = vmatprep.subr.mxu0 0.0
    %1135 = vmatpush1.msra.mxu0 0.0
    %1136 = vmatprep.subr.mxu0 0.0
    %1137 = vmatpush1.msra.mxu0 0.0
    %1138 = vmatprep.subr.mxu0 0.0
    %1139 = vmatpush1.msra.mxu0 %v284
    %1140 = vmatprep.subr.mxu0 0.0
    %1141 = vmatpush1.msra.mxu0 %v283
    %1142 = vmatprep.subr.mxu0 0.0
    %1143 = vmatpush1.msra.mxu0 %v282
    %1144 = vmatprep.subr.mxu0 0.0
    %1145 = vmatpush1.msra.mxu0 %v281
    %1146 = vmatprep.subr.mxu0 0.0
    %1147 = vmatpush2.msra.mxu0 0.0
    %1148 = vmatprep.subr.mxu0 0.0
    %1149 = vmatpush2.msra.mxu0 0.0
    %1150 = vmatprep.subr.mxu0 0.0
    %1151 = vmatpush2.msra.mxu0 0.0
    %1152 = vmatprep.subr.mxu0 0.0
    %1153 = vmatpush2.msra.mxu0 0.0
    %1154 = vmatprep.subr.mxu0 0.0
    %1155 = vmatpush2.msra.mxu0 0.0
    %1156 = vmatprep.subr.mxu0 0.0
    %1157 = vmatpush2.msra.mxu0 0.0
    %1158 = vmatprep.subr.mxu0 0.0
    %1159 = vmatpush2.msra.mxu0 0.0
    %1160 = vmatprep.subr.mxu0 0.0
    %1161 = vmatpush2.msra.mxu0 0.0
    %1162 = vmatprep.subr.mxu0 0.0
    %1163 = vmatpush2.msra.mxu0 0.0
    %1164 = vmatprep.subr.mxu0 0.0
    %1165 = vmatpush2.msra.mxu0 0.0
    %1166 = vmatprep.subr.mxu0 0.0
    %1167 = vmatpush2.msra.mxu0 0.0
    %1168 = vmatprep.subr.mxu0 0.0
    %1169 = vmatpush2.msra.mxu0 0.0
    %1170 = vmatprep.subr.mxu0 0.0
    %1171 = vmatpush2.msra.mxu0 0.0
    %1172 = vmatprep.subr.mxu0 0.0
    %1173 = vmatpush2.msra.mxu0 0.0
    %1174 = vmatprep.subr.mxu0 0.0
    %1175 = vmatpush2.msra.mxu0 0.0
    %1176 = vmatprep.subr.mxu0 0.0
    %1177 = vmatpush2.msra.mxu0 0.0
    %1178 = vmatprep.mubr.f32.mxu0 0.0
    %1179 = vmatmul.mubr.f32.gmra.mxu0 %v1106
    %v1180 = vpop.f32.mrf.mxu0
    %v1181 = vadd.f32 %v1104, %v1180
    %v1182 = vpop.f32.mrf.mxu0
    %1183 = vmatprep.mubr.f32.mxu0 0.0
    %1184 = vmatmul.mubr.f32.gmra.mxu0 %v1109
    %v1185 = vpop.f32.mrf.mxu0
    %v1186 = vadd.f32 %v1104, %v1185
    %v1187 = vpop.f32.mrf.mxu0
    %1188 = vmatprep.mubr.f32.mxu0 0.0
    %1189 = vmatmul.mubr.f32.gmra.mxu0 %v1112
    %v1190 = vpop.f32.mrf.mxu0
    %v1191 = vadd.f32 %v1104, %v1190
    %v1192 = vpop.f32.mrf.mxu0
    %1193 = vdwg.mxu0
    %v1194 = vmul.f32 %v1181, %v1181
    %v1195 = vmul.f32 %v1186, %v1186
    %v1196 = vmul.f32 %v1191, %v1191
    %v1197 = vmul.f32 %v1181, %v1194
    %v1198 = vmul.f32 %v1186, %v1195
    %v1199 = vmul.f32 %v1191, %v1196
    %v1200 = vmul.f32 %v1197, 0.044715
    %v1201 = vmul.f32 %v1198, 0.044715
    %v1202 = vmul.f32 %v1199, 0.044715
    %v1203 = vadd.f32 %v1181, %v1200
    %v1204 = vadd.f32 %v1186, %v1201
    %v1205 = vadd.f32 %v1191, %v1202
    %v1206 = vmul.f32 %v1203, 0.7978846
    %v1207 = vmul.f32 %v1204, 0.7978846
    %v1208 = vmul.f32 %v1205, 0.7978846
    %v1209 = vtanh.pop %v1206
    %v1210 = vtanh.pop %v1207
    %v1211 = vtanh.pop %v1208
    %v1212 = vadd.f32 %v1209, 1.0
    %v1213 = vadd.f32 %v1210, 1.0
    %v1214 = vadd.f32 %v1211, 1.0
    %v1215 = vmul.f32 %v1212, 0.5
    %v1216 = vmul.f32 %v1213, 0.5
    %v1217 = vmul.f32 %v1214, 0.5
    %v1218 = vmul.f32 %v1181, %v1215
    %v1219 = vmul.f32 %v1186, %v1216
    %v1220 = vmul.f32 %v1191, %v1217
    %v1221 = vlaneseq
    %v1222 = vshrl.u32 %v1221, 7
    %v1223 = vsub.s32 0, %v1222
    %v1224 = vrot.slane %v288, %v1223
    %vm1225 = vcmask 97280
    %v1227 = vsel %vm1225, %v1218, 0
    %v1230 = vsel %vm1225, %v1219, 0
    %v1233 = vsel %vm1225, %v1220, 0
    %vm1235 = vcmask 1043456
    %v1237 = vsel %vm1235, %v287, 0
    %1239 = vmatprep.subr.mxu0 0.0
    %1240 = vmatpush1.msra.mxu0 0.0
    %1241 = vmatprep.subr.mxu0 0.0
    %1242 = vmatpush1.msra.mxu0 0.0
    %1243 = vmatprep.subr.mxu0 0.0
    %1244 = vmatpush1.msra.mxu0 0.0
    %1245 = vmatprep.subr.mxu0 0.0
    %1246 = vmatpush1.msra.mxu0 0.0
    %1247 = vmatprep.subr.mxu0 0.0
    %1248 = vmatpush1.msra.mxu0 0.0
    %1249 = vmatprep.subr.mxu0 0.0
    %1250 = vmatpush1.msra.mxu0 0.0
    %1251 = vmatprep.subr.mxu0 0.0
    %1252 = vmatpush1.msra.mxu0 0.0
    %1253 = vmatprep.subr.mxu0 0.0
    %1254 = vmatpush1.msra.mxu0 0.0
    %1255 = vmatprep.subr.mxu0 0.0
    %1256 = vmatpush1.msra.mxu0 0.0
    %1257 = vmatprep.subr.mxu0 0.0
    %1258 = vmatpush1.msra.mxu0 0.0
    %1259 = vmatprep.subr.mxu0 0.0
    %1260 = vmatpush1.msra.mxu0 0.0
    %1261 = vmatprep.subr.mxu0 0.0
    %1262 = vmatpush1.msra.mxu0 0.0
    %1263 = vmatprep.subr.mxu0 0.0
    %1264 = vmatpush1.msra.mxu0 0.0
    %1265 = vmatprep.subr.mxu0 0.0
    %1266 = vmatpush1.msra.mxu0 0.0
    %1267 = vmatprep.subr.mxu0 0.0
    %1268 = vmatpush1.msra.mxu0 %v1237
    %1269 = vmatprep.subr.mxu0 0.0
    %1270 = vmatpush1.msra.mxu0 %v286
    %1271 = vmatprep.subr.mxu0 0.0
    %1272 = vmatpush2.msra.mxu0 0.0
    %1273 = vmatprep.subr.mxu0 0.0
    %1274 = vmatpush2.msra.mxu0 0.0
    %1275 = vmatprep.subr.mxu0 0.0
    %1276 = vmatpush2.msra.mxu0 0.0
    %1277 = vmatprep.subr.mxu0 0.0
    %1278 = vmatpush2.msra.mxu0 0.0
    %1279 = vmatprep.subr.mxu0 0.0
    %1280 = vmatpush2.msra.mxu0 0.0
    %1281 = vmatprep.subr.mxu0 0.0
    %1282 = vmatpush2.msra.mxu0 0.0
    %1283 = vmatprep.subr.mxu0 0.0
    %1284 = vmatpush2.msra.mxu0 0.0
    %1285 = vmatprep.subr.mxu0 0.0
    %1286 = vmatpush2.msra.mxu0 0.0
    %1287 = vmatprep.subr.mxu0 0.0
    %1288 = vmatpush2.msra.mxu0 0.0
    %1289 = vmatprep.subr.mxu0 0.0
    %1290 = vmatpush2.msra.mxu0 0.0
    %1291 = vmatprep.subr.mxu0 0.0
    %1292 = vmatpush2.msra.mxu0 0.0
    %1293 = vmatprep.subr.mxu0 0.0
    %1294 = vmatpush2.msra.mxu0 0.0
    %1295 = vmatprep.subr.mxu0 0.0
    %1296 = vmatpush2.msra.mxu0 0.0
    %1297 = vmatprep.subr.mxu0 0.0
    %1298 = vmatpush2.msra.mxu0 0.0
    %1299 = vmatprep.subr.mxu0 0.0
    %1300 = vmatpush2.msra.mxu0 0.0
    %1301 = vmatprep.subr.mxu0 0.0
    %1302 = vmatpush2.msra.mxu0 0.0
    %1303 = vmatprep.mubr.f32.mxu0 0.0
    %1304 = vmatmul.mubr.f32.gmra.mxu0 %v1227
    %v1305 = vpop.f32.mrf.mxu0
    %v1306 = vadd.f32 %v1224, %v1305
    %v1307 = vpop.f32.mrf.mxu0
    %1308 = vmatprep.mubr.f32.mxu0 0.0
    %1309 = vmatmul.mubr.f32.gmra.mxu0 %v1230
    %v1310 = vpop.f32.mrf.mxu0
    %v1311 = vadd.f32 %v1224, %v1310
    %v1312 = vpop.f32.mrf.mxu0
    %1313 = vmatprep.mubr.f32.mxu0 0.0
    %1314 = vmatmul.mubr.f32.gmra.mxu0 %v1233
    %v1315 = vpop.f32.mrf.mxu0
    %v1316 = vadd.f32 %v1224, %v1315
    %v1317 = vpop.f32.mrf.mxu0
    %1318 = vdwg.mxu0
    %v1319 = vadd.f32 %v1045, %v1306
    %v1320 = vadd.f32 %v1046, %v1311
    %v1321 = vadd.f32 %v1047, %v1316
    %v1322 = vld [vmem:[#allocation2 + $0x160] sm:$0x1]
    %v1323 = vld [vmem:[#allocation2 + $0x168] sm:$0x1]
    %v1324 = vld [vmem:[#allocation2 + $0x170] sm:$0xff]
    %v1325 = vld [vmem:[#allocation2 + $0x178] sm:$0xff]
    %v1326 = vld [vmem:[#allocation2 + $0x180] sm:$0xff]
    %v1327 = vld [vmem:[#allocation2 + $0x188] sm:$0xff]
    %v1328 = vld [vmem:[#allocation2 + $0x190] sm:$0xff]
    %v1329 = vld [vmem:[#allocation2 + $0x198] sm:$0xff]
    %v1330 = vld [vmem:[#allocation2 + $0x1a0] sm:$0xff]
    %v1331 = vld [vmem:[#allocation2 + $0x1a8] sm:$0xff]
    %v1332 = vld [vmem:[#allocation2 + $0x1b0] sm:$0x1]
    %v1333 = vld [vmem:[#allocation2 + $0x1b8] sm:$0x1]
    %v1334 = vld [vmem:[#allocation2 + $0x1c0] sm:$0x1]
    %v1335 = vld [vmem:[#allocation2 + $0x1c8] sm:$0xff]
    %v1336 = vld [vmem:[#allocation2 + $0x1d0] sm:$0xff]
    %v1337 = vld [vmem:[#allocation2 + $0x1d8] sm:$0xff]
    %v1338 = vld [vmem:[#allocation2 + $0x1e0] sm:$0xff]
    %v1339 = vld [vmem:[#allocation2 + $0x1e8] sm:$0x1]
    %v1340 = vld [vmem:[#allocation2 + $0x1f0] sm:$0xff]
    %v1341 = vld [vmem:[#allocation2 + $0x1f8] sm:$0xf]
    %v1342 = vld [vmem:[#allocation2 + $0x200] sm:$0x1]
    %v1343 = vsel %vm289, %v1319, 0.0
    %1344 = vadd.xlane.f32.xlu0 %v1343
    %v1345 = vpop.xlane.xlu0 %1344
    %v1346 = vsel %vm289, %v1320, 0.0
    %1347 = vadd.xlane.f32.xlu0 %v1346
    %v1348 = vpop.xlane.xlu0 %1347
    %v1349 = vsel %vm296, %v1321, 0.0
    %1350 = vadd.xlane.f32.xlu0 %v1349
    %v1351 = vpop.xlane.xlu0 %1350
    %v1352 = vmul.f32 %v1345, %v300
    %v1353 = vmul.f32 %v1348, %v300
    %v1354 = vmul.f32 %v1351, %v300
    %v1355 = vsub.f32 %v1319, %v1352
    %v1356 = vsub.f32 %v1320, %v1353
    %v1357 = vsub.f32 %v1321, %v1354
    %v1358 = vmul.f32 %v1355, %v1355
    %v1359 = vmul.f32 %v1356, %v1356
    %v1360 = vmul.f32 %v1357, %v1357
    %v1361 = vsel %vm289, %v1358, 0.0
    %1362 = vadd.xlane.f32.xlu0 %v1361
    %v1363 = vpop.xlane.xlu0 %1362
    %v1364 = vsel %vm289, %v1359, 0.0
    %1365 = vadd.xlane.f32.xlu0 %v1364
    %v1366 = vpop.xlane.xlu0 %1365
    %v1367 = vsel %vm296, %v1360, 0.0
    %1368 = vadd.xlane.f32.xlu0 %v1367
    %v1369 = vpop.xlane.xlu0 %1368
    %v1370 = vmul.f32 %v1363, %v300
    %v1371 = vmul.f32 %v1366, %v300
    %v1372 = vmul.f32 %v1369, %v300
    %v1373 = vadd.f32 %v1370, 1e-05
    %v1374 = vadd.f32 %v1371, 1e-05
    %v1375 = vadd.f32 %v1372, 1e-05
    %v1376 = vrsqrt.pop %v1373
    %v1377 = vrsqrt.pop %v1374
    %v1378 = vrsqrt.pop %v1375
    %v1379 = vmul.f32 %v1355, %v1376
    %v1380 = vmul.f32 %v1356, %v1377
    %v1381 = vmul.f32 %v1357, %v1378
    %v1382 = vlaneseq
    %v1383 = vshrl.u32 %v1382, 7
    %v1384 = vsub.s32 0, %v1383
    %v1385 = vrot.slane %v1322, %v1384
    %v1386 = vmul.f32 %v1379, %v1385
    %v1387 = vmul.f32 %v1380, %v1385
    %v1388 = vmul.f32 %v1381, %v1385
    %v1389 = vlaneseq
    %v1390 = vshrl.u32 %v1389, 7
    %v1391 = vsub.s32 0, %v1390
    %v1392 = vrot.slane %v1323, %v1391
    %v1393 = vadd.f32 %v1386, %v1392
    %v1394 = vadd.f32 %v1387, %v1392
    %v1395 = vadd.f32 %v1388, %v1392
    %v1396 = vmul.f32 %v1379, %v348
    %v1397 = vmul.f32 %v1380, %v348
    %v1398 = vmul.f32 %v1381, %v348
    %v1399 = vadd.f32 %v1396, %v355
    %v1400 = vadd.f32 %v1397, %v355
    %v1401 = vadd.f32 %v1398, %v355
    %v1403 = vsel %vm289, %v1393, 0
    %v1406 = vsel %vm289, %v1394, 0
    %v1409 = vsel %vm289, %v1395, 0
    %1411 = vmatprep.subr.mxu0 0.0
    %1412 = vmatpush1.msra.mxu0 0.0
    %1413 = vmatprep.subr.mxu0 0.0
    %1414 = vmatpush1.msra.mxu0 0.0
    %1415 = vmatprep.subr.mxu0 0.0
    %1416 = vmatpush1.msra.mxu0 0.0
    %1417 = vmatprep.subr.mxu0 0.0
    %1418 = vmatpush1.msra.mxu0 0.0
    %1419 = vmatprep.subr.mxu0 0.0
    %1420 = vmatpush1.msra.mxu0 0.0
    %1421 = vmatprep.subr.mxu0 0.0
    %1422 = vmatpush1.msra.mxu0 0.0
    %1423 = vmatprep.subr.mxu0 0.0
    %1424 = vmatpush1.msra.mxu0 0.0
    %1425 = vmatprep.subr.mxu0 0.0
    %1426 = vmatpush1.msra.mxu0 0.0
    %1427 = vmatprep.subr.mxu0 0.0
    %1428 = vmatpush1.msra.mxu0 0.0
    %1429 = vmatprep.subr.mxu0 0.0
    %1430 = vmatpush1.msra.mxu0 0.0
    %1431 = vmatprep.subr.mxu0 0.0
    %1432 = vmatpush1.msra.mxu0 0.0
    %1433 = vmatprep.subr.mxu0 0.0
    %1434 = vmatpush1.msra.mxu0 0.0
    %1435 = vmatprep.subr.mxu0 0.0
    %1436 = vmatpush1.msra.mxu0 %v1327
    %1437 = vmatprep.subr.mxu0 0.0
    %1438 = vmatpush1.msra.mxu0 %v1326
    %1439 = vmatprep.subr.mxu0 0.0
    %1440 = vmatpush1.msra.mxu0 %v1325
    %1441 = vmatprep.subr.mxu0 0.0
    %1442 = vmatpush1.msra.mxu0 %v1324
    %1443 = vmatprep.subr.mxu0 0.0
    %1444 = vmatpush2.msra.mxu0 0.0
    %1445 = vmatprep.subr.mxu0 0.0
    %1446 = vmatpush2.msra.mxu0 0.0
    %1447 = vmatprep.subr.mxu0 0.0
    %1448 = vmatpush2.msra.mxu0 0.0
    %1449 = vmatprep.subr.mxu0 0.0
    %1450 = vmatpush2.msra.mxu0 0.0
    %1451 = vmatprep.subr.mxu0 0.0
    %1452 = vmatpush2.msra.mxu0 0.0
    %1453 = vmatprep.subr.mxu0 0.0
    %1454 = vmatpush2.msra.mxu0 0.0
    %1455 = vmatprep.subr.mxu0 0.0
    %1456 = vmatpush2.msra.mxu0 0.0
    %1457 = vmatprep.subr.mxu0 0.0
    %1458 = vmatpush2.msra.mxu0 0.0
    %1459 = vmatprep.subr.mxu0 0.0
    %1460 = vmatpush2.msra.mxu0 0.0
    %1461 = vmatprep.subr.mxu0 0.0
    %1462 = vmatpush2.msra.mxu0 0.0
    %1463 = vmatprep.subr.mxu0 0.0
    %1464 = vmatpush2.msra.mxu0 0.0
    %1465 = vmatprep.subr.mxu0 0.0
    %1466 = vmatpush2.msra.mxu0 0.0
    %1467 = vmatprep.subr.mxu0 0.0
    %1468 = vmatpush2.msra.mxu0 0.0
    %1469 = vmatprep.subr.mxu0 0.0
    %1470 = vmatpush2.msra.mxu0 0.0
    %1471 = vmatprep.subr.mxu0 0.0
    %1472 = vmatpush2.msra.mxu0 0.0
    %1473 = vmatprep.subr.mxu0 0.0
    %1474 = vmatpush2.msra.mxu0 0.0
    %1475 = vmatprep.mubr.f32.mxu0 0.0
    %1476 = vmatmul.mubr.f32.gmra.mxu0 %v1403
    %v1477 = vpop.f32.mrf.mxu0
    %v1478 = vadd.f32 0.0, %v1477
    %v1479 = vpop.f32.mrf.mxu0
    %1480 = vmatprep.mubr.f32.mxu0 0.0
    %1481 = vmatmul.mubr.f32.gmra.mxu0 %v1406
    %v1482 = vpop.f32.mrf.mxu0
    %v1483 = vadd.f32 0.0, %v1482
    %v1484 = vpop.f32.mrf.mxu0
    %1485 = vmatprep.mubr.f32.mxu0 0.0
    %1486 = vmatmul.mubr.f32.gmra.mxu0 %v1409
    %v1487 = vpop.f32.mrf.mxu0
    %v1488 = vadd.f32 0.0, %v1487
    %v1489 = vpop.f32.mrf.mxu0
    %1490 = vdwg.mxu0
    %v1492 = vsel %vm458, %v1488, 0
    %1494 = vmatprep.subr.mxu0 0.0
    %1495 = vmatpush1.msra.mxu0 0.0
    %1496 = vmatprep.subr.mxu0 0.0
    %1497 = vmatpush1.msra.mxu0 0.0
    %1498 = vmatprep.subr.mxu0 0.0
    %1499 = vmatpush1.msra.mxu0 0.0
    %1500 = vmatprep.subr.mxu0 0.0
    %1501 = vmatpush1.msra.mxu0 0.0
    %1502 = vmatprep.subr.mxu0 0.0
    %1503 = vmatpush1.msra.mxu0 0.0
    %1504 = vmatprep.subr.mxu0 0.0
    %1505 = vmatpush1.msra.mxu0 0.0
    %1506 = vmatprep.subr.mxu0 0.0
    %1507 = vmatpush1.msra.mxu0 0.0
    %1508 = vmatprep.subr.mxu0 0.0
    %1509 = vmatpush1.msra.mxu0 0.0
    %1510 = vmatprep.subr.mxu0 0.0
    %1511 = vmatpush1.msra.mxu0 0.0
    %1512 = vmatprep.subr.mxu0 0.0
    %1513 = vmatpush1.msra.mxu0 0.0
    %1514 = vmatprep.subr.mxu0 0.0
    %1515 = vmatpush1.msra.mxu0 0.0
    %1516 = vmatprep.subr.mxu0 0.0
    %1517 = vmatpush1.msra.mxu0 0.0
    %1518 = vmatprep.subr.mxu0 0.0
    %1519 = vmatpush1.msra.mxu0 0.0
    %1520 = vmatprep.subr.mxu0 0.0
    %1521 = vmatpush1.msra.mxu0 %v1492
    %1522 = vmatprep.subr.mxu0 0.0
    %1523 = vmatpush1.msra.mxu0 %v1483
    %1524 = vmatprep.subr.mxu0 0.0
    %1525 = vmatpush1.msra.mxu0 %v1478
    %1526 = vmatprep.subr.mxu0 0.0
    %1527 = vmatpush2.msra.mxu0 0.0
    %1528 = vmatprep.subr.mxu0 0.0
    %1529 = vmatpush2.msra.mxu0 0.0
    %1530 = vmatprep.subr.mxu0 0.0
    %1531 = vmatpush2.msra.mxu0 0.0
    %1532 = vmatprep.subr.mxu0 0.0
    %1533 = vmatpush2.msra.mxu0 0.0
    %1534 = vmatprep.subr.mxu0 0.0
    %1535 = vmatpush2.msra.mxu0 0.0
    %1536 = vmatprep.subr.mxu0 0.0
    %1537 = vmatpush2.msra.mxu0 0.0
    %1538 = vmatprep.subr.mxu0 0.0
    %1539 = vmatpush2.msra.mxu0 0.0
    %1540 = vmatprep.subr.mxu0 0.0
    %1541 = vmatpush2.msra.mxu0 0.0
    %1542 = vmatprep.subr.mxu0 0.0
    %1543 = vmatpush2.msra.mxu0 0.0
    %1544 = vmatprep.subr.mxu0 0.0
    %1545 = vmatpush2.msra.mxu0 0.0
    %1546 = vmatprep.subr.mxu0 0.0
    %1547 = vmatpush2.msra.mxu0 0.0
    %1548 = vmatprep.subr.mxu0 0.0
    %1549 = vmatpush2.msra.mxu0 0.0
    %1550 = vmatprep.subr.mxu0 0.0
    %1551 = vmatpush2.msra.mxu0 0.0
    %1552 = vmatprep.subr.mxu0 0.0
    %1553 = vmatpush2.msra.mxu0 0.0
    %1554 = vmatprep.subr.mxu0 0.0
    %1555 = vmatpush2.msra.mxu0 0.0
    %1556 = vmatprep.subr.mxu0 0.0
    %1557 = vmatpush2.msra.mxu0 0.0
    %1558 = vmatprep.mubr.f32.mxu0 0.0
    %1559 = vmatmul.mubr.f32.gmra.mxu0 %v450
    %v1560 = vpop.f32.mrf.mxu0
    %v1561 = vadd.f32 0.0, %v1560
    %v1562 = vpop.f32.mrf.mxu0
    %1563 = vmatprep.mubr.f32.mxu0 0.0
    %1564 = vmatmul.mubr.f32.gmra.mxu0 %v453
    %v1565 = vpop.f32.mrf.mxu0
    %v1566 = vadd.f32 0.0, %v1565
    %v1567 = vpop.f32.mrf.mxu0
    %1568 = vmatprep.mubr.f32.mxu0 0.0
    %1569 = vmatmul.mubr.f32.gmra.mxu0 %v456
    %v1570 = vpop.f32.mrf.mxu0
    %v1571 = vadd.f32 0.0, %v1570
    %v1572 = vpop.f32.mrf.mxu0
    %1573 = vdwg.mxu0
    %1576 = vrot.lane.b32.xlu0 %v1478, 96
    %v1577 = vpop.permute.xlu0 %1576
    %1578 = vrot.lane.b32.xlu0 %v1483, 96
    %v1579 = vpop.permute.xlu0 %1578
    %1580 = vrot.lane.b32.xlu0 %v1488, 96
    %v1581 = vpop.permute.xlu0 %1580
    %v1585 = vmul.f32 %v1561, %v1577
    %v1586 = vmul.f32 %v1566, %v1579
    %v1587 = vmul.f32 %v1571, %v1581
    %v1589 = vsel %vm289, %v1585, 0
    %v1592 = vsel %vm289, %v1586, 0
    %v1595 = vsel %vm289, %v1587, 0
    %1597 = vmatprep.subr.mxu0 0.0
    %1598 = vmatpush1.msra.mxu0 0.0
    %1599 = vmatprep.subr.mxu0 0.0
    %1600 = vmatpush1.msra.mxu0 0.0
    %1601 = vmatprep.subr.mxu0 0.0
    %1602 = vmatpush1.msra.mxu0 0.0
    %1603 = vmatprep.subr.mxu0 0.0
    %1604 = vmatpush1.msra.mxu0 0.0
    %1605 = vmatprep.subr.mxu0 0.0
    %1606 = vmatpush1.msra.mxu0 0.0
    %1607 = vmatprep.subr.mxu0 0.0
    %1608 = vmatpush1.msra.mxu0 0.0
    %1609 = vmatprep.subr.mxu0 0.0
    %1610 = vmatpush1.msra.mxu0 0.0
    %1611 = vmatprep.subr.mxu0 0.0
    %1612 = vmatpush1.msra.mxu0 0.0
    %1613 = vmatprep.subr.mxu0 0.0
    %1614 = vmatpush1.msra.mxu0 0.0
    %1615 = vmatprep.subr.mxu0 0.0
    %1616 = vmatpush1.msra.mxu0 0.0
    %1617 = vmatprep.subr.mxu0 0.0
    %1618 = vmatpush1.msra.mxu0 0.0
    %1619 = vmatprep.subr.mxu0 0.0
    %1620 = vmatpush1.msra.mxu0 0.0
    %1621 = vmatprep.subr.mxu0 0.0
    %1622 = vmatpush1.msra.mxu0 %v29
    %1623 = vmatprep.subr.mxu0 0.0
    %1624 = vmatpush1.msra.mxu0 %v28
    %1625 = vmatprep.subr.mxu0 0.0
    %1626 = vmatpush1.msra.mxu0 %v27
    %1627 = vmatprep.subr.mxu0 0.0
    %1628 = vmatpush1.msra.mxu0 %v26
    %1629 = vmatprep.subr.mxu0 0.0
    %1630 = vmatpush2.msra.mxu0 0.0
    %1631 = vmatprep.subr.mxu0 0.0
    %1632 = vmatpush2.msra.mxu0 0.0
    %1633 = vmatprep.subr.mxu0 0.0
    %1634 = vmatpush2.msra.mxu0 0.0
    %1635 = vmatprep.subr.mxu0 0.0
    %1636 = vmatpush2.msra.mxu0 0.0
    %1637 = vmatprep.subr.mxu0 0.0
    %1638 = vmatpush2.msra.mxu0 0.0
    %1639 = vmatprep.subr.mxu0 0.0
    %1640 = vmatpush2.msra.mxu0 0.0
    %1641 = vmatprep.subr.mxu0 0.0
    %1642 = vmatpush2.msra.mxu0 0.0
    %1643 = vmatprep.subr.mxu0 0.0
    %1644 = vmatpush2.msra.mxu0 0.0
    %1645 = vmatprep.subr.mxu0 0.0
    %1646 = vmatpush2.msra.mxu0 0.0
    %1647 = vmatprep.subr.mxu0 0.0
    %1648 = vmatpush2.msra.mxu0 0.0
    %1649 = vmatprep.subr.mxu0 0.0
    %1650 = vmatpush2.msra.mxu0 0.0
    %1651 = vmatprep.subr.mxu0 0.0
    %1652 = vmatpush2.msra.mxu0 0.0
    %1653 = vmatprep.subr.mxu0 0.0
    %1654 = vmatpush2.msra.mxu0 0.0
    %1655 = vmatprep.subr.mxu0 0.0
    %1656 = vmatpush2.msra.mxu0 0.0
    %1657 = vmatprep.subr.mxu0 0.0
    %1658 = vmatpush2.msra.mxu0 0.0
    %1659 = vmatprep.subr.mxu0 0.0
    %1660 = vmatpush2.msra.mxu0 0.0
    %1661 = vmatprep.mubr.f32.mxu0 0.0
    %1662 = vmatmul.mubr.f32.gmra.mxu0 %v1589
    %v1663 = vpop.f32.mrf.mxu0
    %v1664 = vadd.f32 0.0, %v1663
    %v1665 = vpop.f32.mrf.mxu0
    %1666 = vmatprep.mubr.f32.mxu0 0.0
    %1667 = vmatmul.mubr.f32.gmra.mxu0 %v1592
    %v1668 = vpop.f32.mrf.mxu0
    %v1669 = vadd.f32 0.0, %v1668
    %v1670 = vpop.f32.mrf.mxu0
    %1671 = vmatprep.mubr.f32.mxu0 0.0
    %1672 = vmatmul.mubr.f32.gmra.mxu0 %v1595
    %v1673 = vpop.f32.mrf.mxu0
    %v1674 = vadd.f32 0.0, %v1673
    %v1675 = vpop.f32.mrf.mxu0
    %1676 = vdwg.mxu0
    %v1677 = vsel %vm645, %v1664, -inf
    %v1678 = vsel %vm645, %v1669, -inf
    %v1679 = vsel %vm648, %v1674, -inf
    %v1680 = vmax.f32 %v1677, %v1678
    %v1681 = vmax.f32 %v1680, %v1679
    %v1682 = vrot.slane %v1681, 4
    %v1683 = vmax.f32 %v1681, %v1682
    %v1684 = vrot.slane %v1683, 2
    %v1685 = vmax.f32 %v1683, %v1684
    %v1686 = vrot.slane %v1685, 1
    %v1687 = vmax.f32 %v1685, %v1686
    %v1688 = vsub.f32 %v1664, %v1687
    %v1689 = vsub.f32 %v1669, %v1687
    %v1690 = vsub.f32 %v1674, %v1687
    %v1691 = vmul.f32 %v1688, 1.442695
    %v1692 = vpow.pop %v1691
    %v1693 = vmul.f32 %v1689, 1.442695
    %v1694 = vpow.pop %v1693
    %v1695 = vmul.f32 %v1690, 1.442695
    %v1696 = vpow.pop %v1695
    %v1698 = vsel %vm458, %v1696, 0
    %1700 = vmatprep.subr.mxu0 0.0
    %1701 = vmatpush1.msra.mxu0 0.0
    %1702 = vmatprep.subr.mxu0 0.0
    %1703 = vmatpush1.msra.mxu0 0.0
    %1704 = vmatprep.subr.mxu0 0.0
    %1705 = vmatpush1.msra.mxu0 0.0
    %1706 = vmatprep.subr.mxu0 0.0
    %1707 = vmatpush1.msra.mxu0 0.0
    %1708 = vmatprep.subr.mxu0 0.0
    %1709 = vmatpush1.msra.mxu0 0.0
    %1710 = vmatprep.subr.mxu0 0.0
    %1711 = vmatpush1.msra.mxu0 0.0
    %1712 = vmatprep.subr.mxu0 0.0
    %1713 = vmatpush1.msra.mxu0 0.0
    %1714 = vmatprep.subr.mxu0 0.0
    %1715 = vmatpush1.msra.mxu0 0.0
    %1716 = vmatprep.subr.mxu0 0.0
    %1717 = vmatpush1.msra.mxu0 0.0
    %1718 = vmatprep.subr.mxu0 0.0
    %1719 = vmatpush1.msra.mxu0 0.0
    %1720 = vmatprep.subr.mxu0 0.0
    %1721 = vmatpush1.msra.mxu0 0.0
    %1722 = vmatprep.subr.mxu0 0.0
    %1723 = vmatpush1.msra.mxu0 0.0
    %1724 = vmatprep.subr.mxu0 0.0
    %1725 = vmatpush1.msra.mxu0 0.0
    %1726 = vmatprep.subr.mxu0 0.0
    %1727 = vmatpush1.msra.mxu0 %v1698
    %1728 = vmatprep.subr.mxu0 0.0
    %1729 = vmatpush1.msra.mxu0 %v1694
    %1730 = vmatprep.subr.mxu0 0.0
    %1731 = vmatpush1.msra.mxu0 %v1692
    %1732 = vmatprep.subr.mxu0 0.0
    %1733 = vmatpush2.msra.mxu0 0.0
    %1734 = vmatprep.subr.mxu0 0.0
    %1735 = vmatpush2.msra.mxu0 0.0
    %1736 = vmatprep.subr.mxu0 0.0
    %1737 = vmatpush2.msra.mxu0 0.0
    %1738 = vmatprep.subr.mxu0 0.0
    %1739 = vmatpush2.msra.mxu0 0.0
    %1740 = vmatprep.subr.mxu0 0.0
    %1741 = vmatpush2.msra.mxu0 0.0
    %1742 = vmatprep.subr.mxu0 0.0
    %1743 = vmatpush2.msra.mxu0 0.0
    %1744 = vmatprep.subr.mxu0 0.0
    %1745 = vmatpush2.msra.mxu0 0.0
    %1746 = vmatprep.subr.mxu0 0.0
    %1747 = vmatpush2.msra.mxu0 0.0
    %1748 = vmatprep.subr.mxu0 0.0
    %1749 = vmatpush2.msra.mxu0 0.0
    %1750 = vmatprep.subr.mxu0 0.0
    %1751 = vmatpush2.msra.mxu0 0.0
    %1752 = vmatprep.subr.mxu0 0.0
    %1753 = vmatpush2.msra.mxu0 0.0
    %1754 = vmatprep.subr.mxu0 0.0
    %1755 = vmatpush2.msra.mxu0 0.0
    %1756 = vmatprep.subr.mxu0 0.0
    %1757 = vmatpush2.msra.mxu0 0.0
    %1758 = vmatprep.subr.mxu0 0.0
    %1759 = vmatpush2.msra.mxu0 0.0
    %1760 = vmatprep.subr.mxu0 0.0
    %1761 = vmatpush2.msra.mxu0 0.0
    %1762 = vmatprep.subr.mxu0 0.0
    %1763 = vmatpush2.msra.mxu0 0.0
    %1764 = vmatprep.mubr.f32.mxu0 0.0
    %1765 = vmatmul.mubr.f32.gmra.mxu0 %v668
    %v1766 = vpop.f32.mrf.mxu0
    %v1767 = vadd.f32 0.0, %v1766
    %v1768 = vpop.f32.mrf.mxu0
    %1769 = vmatprep.mubr.f32.mxu0 0.0
    %1770 = vmatmul.mubr.f32.gmra.mxu0 %v671
    %v1771 = vpop.f32.mrf.mxu0
    %v1772 = vadd.f32 0.0, %v1771
    %v1773 = vpop.f32.mrf.mxu0
    %1774 = vmatprep.mubr.f32.mxu0 0.0
    %1775 = vmatmul.mubr.f32.gmra.mxu0 %v674
    %v1776 = vpop.f32.mrf.mxu0
    %v1777 = vadd.f32 0.0, %v1776
    %v1778 = vpop.f32.mrf.mxu0
    %1779 = vdwg.mxu0
    %v1780 = vrcp.pop %v1767
    %v1781 = vrcp.pop %v1772
    %v1782 = vrcp.pop %v1777
    %v1783 = vmul.f32 %v1692, %v1780
    %v1784 = vmul.f32 %v1694, %v1781
    %v1785 = vmul.f32 %v1696, %v1782
    %v1787 = vsel %vm645, %v1783, 0
    %v1790 = vsel %vm645, %v1784, 0
    %v1793 = vsel %vm645, %v1785, 0
    %1795 = vmatprep.subr.mxu0 0.0
    %1796 = vmatpush1.msra.mxu0 0.0
    %1797 = vmatprep.subr.mxu0 0.0
    %1798 = vmatpush1.msra.mxu0 0.0
    %1799 = vmatprep.subr.mxu0 0.0
    %1800 = vmatpush1.msra.mxu0 0.0
    %1801 = vmatprep.subr.mxu0 0.0
    %1802 = vmatpush1.msra.mxu0 0.0
    %1803 = vmatprep.subr.mxu0 0.0
    %1804 = vmatpush1.msra.mxu0 0.0
    %1805 = vmatprep.subr.mxu0 0.0
    %1806 = vmatpush1.msra.mxu0 0.0
    %1807 = vmatprep.subr.mxu0 0.0
    %1808 = vmatpush1.msra.mxu0 0.0
    %1809 = vmatprep.subr.mxu0 0.0
    %1810 = vmatpush1.msra.mxu0 0.0
    %1811 = vmatprep.subr.mxu0 0.0
    %1812 = vmatpush1.msra.mxu0 0.0
    %1813 = vmatprep.subr.mxu0 0.0
    %1814 = vmatpush1.msra.mxu0 0.0
    %1815 = vmatprep.subr.mxu0 0.0
    %1816 = vmatpush1.msra.mxu0 0.0
    %1817 = vmatprep.subr.mxu0 0.0
    %1818 = vmatpush1.msra.mxu0 0.0
    %1819 = vmatprep.subr.mxu0 0.0
    %1820 = vmatpush1.msra.mxu0 0.0
    %1821 = vmatprep.subr.mxu0 0.0
    %1822 = vmatpush1.msra.mxu0 0.0
    %1823 = vmatprep.subr.mxu0 0.0
    %1824 = vmatpush1.msra.mxu0 0.0
    %1825 = vmatprep.subr.mxu0 0.0
    %1826 = vmatpush1.msra.mxu0 %v30
    %1827 = vmatprep.subr.mxu0 0.0
    %1828 = vmatpush2.msra.mxu0 0.0
    %1829 = vmatprep.subr.mxu0 0.0
    %1830 = vmatpush2.msra.mxu0 0.0
    %1831 = vmatprep.subr.mxu0 0.0
    %1832 = vmatpush2.msra.mxu0 0.0
    %1833 = vmatprep.subr.mxu0 0.0
    %1834 = vmatpush2.msra.mxu0 0.0
    %1835 = vmatprep.subr.mxu0 0.0
    %1836 = vmatpush2.msra.mxu0 0.0
    %1837 = vmatprep.subr.mxu0 0.0
    %1838 = vmatpush2.msra.mxu0 0.0
    %1839 = vmatprep.subr.mxu0 0.0
    %1840 = vmatpush2.msra.mxu0 0.0
    %1841 = vmatprep.subr.mxu0 0.0
    %1842 = vmatpush2.msra.mxu0 0.0
    %1843 = vmatprep.subr.mxu0 0.0
    %1844 = vmatpush2.msra.mxu0 0.0
    %1845 = vmatprep.subr.mxu0 0.0
    %1846 = vmatpush2.msra.mxu0 0.0
    %1847 = vmatprep.subr.mxu0 0.0
    %1848 = vmatpush2.msra.mxu0 0.0
    %1849 = vmatprep.subr.mxu0 0.0
    %1850 = vmatpush2.msra.mxu0 0.0
    %1851 = vmatprep.subr.mxu0 0.0
    %1852 = vmatpush2.msra.mxu0 0.0
    %1853 = vmatprep.subr.mxu0 0.0
    %1854 = vmatpush2.msra.mxu0 0.0
    %1855 = vmatprep.subr.mxu0 0.0
    %1856 = vmatpush2.msra.mxu0 0.0
    %1857 = vmatprep.subr.mxu0 0.0
    %1858 = vmatpush2.msra.mxu0 0.0
    %1859 = vmatprep.mubr.f32.mxu0 0.0
    %1860 = vmatmul.mubr.f32.gmra.mxu0 %v1787
    %v1861 = vpop.f32.mrf.mxu0
    %v1862 = vadd.f32 0.0, %v1861
    %v1863 = vpop.f32.mrf.mxu0
    %1864 = vmatprep.mubr.f32.mxu0 0.0
    %1865 = vmatmul.mubr.f32.gmra.mxu0 %v1790
    %v1866 = vpop.f32.mrf.mxu0
    %v1867 = vadd.f32 0.0, %v1866
    %v1868 = vpop.f32.mrf.mxu0
    %1869 = vmatprep.mubr.f32.mxu0 0.0
    %1870 = vmatmul.mubr.f32.gmra.mxu0 %v1793
    %v1871 = vpop.f32.mrf.mxu0
    %v1872 = vadd.f32 0.0, %v1871
    %v1873 = vpop.f32.mrf.mxu0
    %1874 = vdwg.mxu0
    %1875 = vrot.lane.b32.xlu0 %v1478, 64
    %v1876 = vpop.permute.xlu0 %1875
    %1877 = vrot.lane.b32.xlu0 %v1483, 64
    %v1878 = vpop.permute.xlu0 %1877
    %1879 = vrot.lane.b32.xlu0 %v1488, 64
    %v1880 = vpop.permute.xlu0 %1879
    %v1884 = vmul.f32 %v1862, %v1876
    %v1885 = vmul.f32 %v1867, %v1878
    %v1886 = vmul.f32 %v1872, %v1880
    %v1888 = vsel %vm458, %v1886, 0
    %1890 = vmatprep.subr.mxu0 0.0
    %1891 = vmatpush1.msra.mxu0 0.0
    %1892 = vmatprep.subr.mxu0 0.0
    %1893 = vmatpush1.msra.mxu0 0.0
    %1894 = vmatprep.subr.mxu0 0.0
    %1895 = vmatpush1.msra.mxu0 0.0
    %1896 = vmatprep.subr.mxu0 0.0
    %1897 = vmatpush1.msra.mxu0 0.0
    %1898 = vmatprep.subr.mxu0 0.0
    %1899 = vmatpush1.msra.mxu0 0.0
    %1900 = vmatprep.subr.mxu0 0.0
    %1901 = vmatpush1.msra.mxu0 0.0
    %1902 = vmatprep.subr.mxu0 0.0
    %1903 = vmatpush1.msra.mxu0 0.0
    %1904 = vmatprep.subr.mxu0 0.0
    %1905 = vmatpush1.msra.mxu0 0.0
    %1906 = vmatprep.subr.mxu0 0.0
    %1907 = vmatpush1.msra.mxu0 0.0
    %1908 = vmatprep.subr.mxu0 0.0
    %1909 = vmatpush1.msra.mxu0 0.0
    %1910 = vmatprep.subr.mxu0 0.0
    %1911 = vmatpush1.msra.mxu0 0.0
    %1912 = vmatprep.subr.mxu0 0.0
    %1913 = vmatpush1.msra.mxu0 0.0
    %1914 = vmatprep.subr.mxu0 0.0
    %1915 = vmatpush1.msra.mxu0 0.0
    %1916 = vmatprep.subr.mxu0 0.0
    %1917 = vmatpush1.msra.mxu0 %v1888
    %1918 = vmatprep.subr.mxu0 0.0
    %1919 = vmatpush1.msra.mxu0 %v1885
    %1920 = vmatprep.subr.mxu0 0.0
    %1921 = vmatpush1.msra.mxu0 %v1884
    %1922 = vmatprep.subr.mxu0 0.0
    %1923 = vmatpush2.msra.mxu0 0.0
    %1924 = vmatprep.subr.mxu0 0.0
    %1925 = vmatpush2.msra.mxu0 0.0
    %1926 = vmatprep.subr.mxu0 0.0
    %1927 = vmatpush2.msra.mxu0 0.0
    %1928 = vmatprep.subr.mxu0 0.0
    %1929 = vmatpush2.msra.mxu0 0.0
    %1930 = vmatprep.subr.mxu0 0.0
    %1931 = vmatpush2.msra.mxu0 0.0
    %1932 = vmatprep.subr.mxu0 0.0
    %1933 = vmatpush2.msra.mxu0 0.0
    %1934 = vmatprep.subr.mxu0 0.0
    %1935 = vmatpush2.msra.mxu0 0.0
    %1936 = vmatprep.subr.mxu0 0.0
    %1937 = vmatpush2.msra.mxu0 0.0
    %1938 = vmatprep.subr.mxu0 0.0
    %1939 = vmatpush2.msra.mxu0 0.0
    %1940 = vmatprep.subr.mxu0 0.0
    %1941 = vmatpush2.msra.mxu0 0.0
    %1942 = vmatprep.subr.mxu0 0.0
    %1943 = vmatpush2.msra.mxu0 0.0
    %1944 = vmatprep.subr.mxu0 0.0
    %1945 = vmatpush2.msra.mxu0 0.0
    %1946 = vmatprep.subr.mxu0 0.0
    %1947 = vmatpush2.msra.mxu0 0.0
    %1948 = vmatprep.subr.mxu0 0.0
    %1949 = vmatpush2.msra.mxu0 0.0
    %1950 = vmatprep.subr.mxu0 0.0
    %1951 = vmatpush2.msra.mxu0 0.0
    %1952 = vmatprep.subr.mxu0 0.0
    %1953 = vmatpush2.msra.mxu0 0.0
    %1954 = vmatprep.mubr.f32.mxu0 0.0
    %1955 = vmatmul.mubr.f32.gmra.mxu0 %v668
    %v1956 = vpop.f32.mrf.mxu0
    %v1957 = vadd.f32 0.0, %v1956
    %v1958 = vpop.f32.mrf.mxu0
    %1959 = vmatprep.mubr.f32.mxu0 0.0
    %1960 = vmatmul.mubr.f32.gmra.mxu0 %v671
    %v1961 = vpop.f32.mrf.mxu0
    %v1962 = vadd.f32 0.0, %v1961
    %v1963 = vpop.f32.mrf.mxu0
    %1964 = vmatprep.mubr.f32.mxu0 0.0
    %1965 = vmatmul.mubr.f32.gmra.mxu0 %v674
    %v1966 = vpop.f32.mrf.mxu0
    %v1967 = vadd.f32 0.0, %v1966
    %v1968 = vpop.f32.mrf.mxu0
    %1969 = vdwg.mxu0
    %v1970 = vlaneseq
    %v1971 = vshrl.u32 %v1970, 7
    %v1972 = vsub.s32 0, %v1971
    %v1973 = vrot.slane %v1332, %v1972
    %v1975 = vsel %vm289, %v1957, 0
    %v1978 = vsel %vm289, %v1962, 0
    %v1981 = vsel %vm289, %v1967, 0
    %1983 = vmatprep.subr.mxu0 0.0
    %1984 = vmatpush1.msra.mxu0 0.0
    %1985 = vmatprep.subr.mxu0 0.0
    %1986 = vmatpush1.msra.mxu0 0.0
    %1987 = vmatprep.subr.mxu0 0.0
    %1988 = vmatpush1.msra.mxu0 0.0
    %1989 = vmatprep.subr.mxu0 0.0
    %1990 = vmatpush1.msra.mxu0 0.0
    %1991 = vmatprep.subr.mxu0 0.0
    %1992 = vmatpush1.msra.mxu0 0.0
    %1993 = vmatprep.subr.mxu0 0.0
    %1994 = vmatpush1.msra.mxu0 0.0
    %1995 = vmatprep.subr.mxu0 0.0
    %1996 = vmatpush1.msra.mxu0 0.0
    %1997 = vmatprep.subr.mxu0 0.0
    %1998 = vmatpush1.msra.mxu0 0.0
    %1999 = vmatprep.subr.mxu0 0.0
    %2000 = vmatpush1.msra.mxu0 0.0
    %2001 = vmatprep.subr.mxu0 0.0
    %2002 = vmatpush1.msra.mxu0 0.0
    %2003 = vmatprep.subr.mxu0 0.0
    %2004 = vmatpush1.msra.mxu0 0.0
    %2005 = vmatprep.subr.mxu0 0.0
    %2006 = vmatpush1.msra.mxu0 0.0
    %2007 = vmatprep.subr.mxu0 0.0
    %2008 = vmatpush1.msra.mxu0 %v1331
    %2009 = vmatprep.subr.mxu0 0.0
    %2010 = vmatpush1.msra.mxu0 %v1330
    %2011 = vmatprep.subr.mxu0 0.0
    %2012 = vmatpush1.msra.mxu0 %v1329
    %2013 = vmatprep.subr.mxu0 0.0
    %2014 = vmatpush1.msra.mxu0 %v1328
    %2015 = vmatprep.subr.mxu0 0.0
    %2016 = vmatpush2.msra.mxu0 0.0
    %2017 = vmatprep.subr.mxu0 0.0
    %2018 = vmatpush2.msra.mxu0 0.0
    %2019 = vmatprep.subr.mxu0 0.0
    %2020 = vmatpush2.msra.mxu0 0.0
    %2021 = vmatprep.subr.mxu0 0.0
    %2022 = vmatpush2.msra.mxu0 0.0
    %2023 = vmatprep.subr.mxu0 0.0
    %2024 = vmatpush2.msra.mxu0 0.0
    %2025 = vmatprep.subr.mxu0 0.0
    %2026 = vmatpush2.msra.mxu0 0.0
    %2027 = vmatprep.subr.mxu0 0.0
    %2028 = vmatpush2.msra.mxu0 0.0
    %2029 = vmatprep.subr.mxu0 0.0
    %2030 = vmatpush2.msra.mxu0 0.0
    %2031 = vmatprep.subr.mxu0 0.0
    %2032 = vmatpush2.msra.mxu0 0.0
    %2033 = vmatprep.subr.mxu0 0.0
    %2034 = vmatpush2.msra.mxu0 0.0
    %2035 = vmatprep.subr.mxu0 0.0
    %2036 = vmatpush2.msra.mxu0 0.0
    %2037 = vmatprep.subr.mxu0 0.0
    %2038 = vmatpush2.msra.mxu0 0.0
    %2039 = vmatprep.subr.mxu0 0.0
    %2040 = vmatpush2.msra.mxu0 0.0
    %2041 = vmatprep.subr.mxu0 0.0
    %2042 = vmatpush2.msra.mxu0 0.0
    %2043 = vmatprep.subr.mxu0 0.0
    %2044 = vmatpush2.msra.mxu0 0.0
    %2045 = vmatprep.subr.mxu0 0.0
    %2046 = vmatpush2.msra.mxu0 0.0
    %2047 = vmatprep.mubr.f32.mxu0 0.0
    %2048 = vmatmul.mubr.f32.gmra.mxu0 %v1975
    %v2049 = vpop.f32.mrf.mxu0
    %v2050 = vadd.f32 %v1973, %v2049
    %v2051 = vpop.f32.mrf.mxu0
    %2052 = vmatprep.mubr.f32.mxu0 0.0
    %2053 = vmatmul.mubr.f32.gmra.mxu0 %v1978
    %v2054 = vpop.f32.mrf.mxu0
    %v2055 = vadd.f32 %v1973, %v2054
    %v2056 = vpop.f32.mrf.mxu0
    %2057 = vmatprep.mubr.f32.mxu0 0.0
    %2058 = vmatmul.mubr.f32.gmra.mxu0 %v1981
    %v2059 = vpop.f32.mrf.mxu0
    %v2060 = vadd.f32 %v1973, %v2059
    %v2061 = vpop.f32.mrf.mxu0
    %2062 = vdwg.mxu0
    %v2063 = vadd.f32 %v1393, %v2050
    %v2064 = vadd.f32 %v1394, %v2055
    %v2065 = vadd.f32 %v1395, %v2060
    %v2066 = vsel %vm255, %v2063, %v1399
    %v2067 = vsel %vm256, %v2064, %v1400
    %v2068 = vsel %vm257, %v2065, %v1401
    %v2069 = vsel %vm289, %v2066, 0.0
    %2070 = vadd.xlane.f32.xlu0 %v2069
    %v2071 = vpop.xlane.xlu0 %2070
    %v2072 = vsel %vm289, %v2067, 0.0
    %2073 = vadd.xlane.f32.xlu0 %v2072
    %v2074 = vpop.xlane.xlu0 %2073
    %v2075 = vsel %vm296, %v2068, 0.0
    %2076 = vadd.xlane.f32.xlu0 %v2075
    %v2077 = vpop.xlane.xlu0 %2076
    %v2078 = vmul.f32 %v2071, %v300
    %v2079 = vmul.f32 %v2074, %v300
    %v2080 = vmul.f32 %v2077, %v300
    %v2081 = vsub.f32 %v2066, %v2078
    %v2082 = vsub.f32 %v2067, %v2079
    %v2083 = vsub.f32 %v2068, %v2080
    %v2084 = vmul.f32 %v2081, %v2081
    %v2085 = vmul.f32 %v2082, %v2082
    %v2086 = vmul.f32 %v2083, %v2083
    %v2087 = vsel %vm289, %v2084, 0.0
    %2088 = vadd.xlane.f32.xlu0 %v2087
    %v2089 = vpop.xlane.xlu0 %2088
    %v2090 = vsel %vm289, %v2085, 0.0
    %2091 = vadd.xlane.f32.xlu0 %v2090
    %v2092 = vpop.xlane.xlu0 %2091
    %v2093 = vsel %vm296, %v2086, 0.0
    %2094 = vadd.xlane.f32.xlu0 %v2093
    %v2095 = vpop.xlane.xlu0 %2094
    %v2096 = vmul.f32 %v2089, %v300
    %v2097 = vmul.f32 %v2092, %v300
    %v2098 = vmul.f32 %v2095, %v300
    %v2099 = vadd.f32 %v2096, 1e-05
    %v2100 = vadd.f32 %v2097, 1e-05
    %v2101 = vadd.f32 %v2098, 1e-05
    %v2102 = vrsqrt.pop %v2099
    %v2103 = vrsqrt.pop %v2100
    %v2104 = vrsqrt.pop %v2101
    %v2105 = vmul.f32 %v2081, %v2102
    %v2106 = vmul.f32 %v2082, %v2103
    %v2107 = vmul.f32 %v2083, %v2104
    %v2108 = vlaneseq
    %v2109 = vshrl.u32 %v2108, 7
    %v2110 = vsub.s32 0, %v2109
    %v2111 = vrot.slane %v1333, %v2110
    %v2112 = vmul.f32 %v2105, %v2111
    %v2113 = vmul.f32 %v2106, %v2111
    %v2114 = vmul.f32 %v2107, %v2111
    %v2115 = vlaneseq
    %v2116 = vshrl.u32 %v2115, 7
    %v2117 = vsub.s32 0, %v2116
    %v2118 = vrot.slane %v1334, %v2117
    %v2119 = vadd.f32 %v2112, %v2118
    %v2120 = vadd.f32 %v2113, %v2118
    %v2121 = vadd.f32 %v2114, %v2118
    %v2122 = vlaneseq
    %v2123 = vshrl.u32 %v2122, 7
    %v2124 = vsub.s32 0, %v2123
    %v2125 = vrot.slane %v1339, %v2124
    %v2127 = vsel %vm289, %v2119, 0
    %v2130 = vsel %vm289, %v2120, 0
    %v2133 = vsel %vm289, %v2121, 0
    %2135 = vmatprep.subr.mxu0 0.0
    %2136 = vmatpush1.msra.mxu0 0.0
    %2137 = vmatprep.subr.mxu0 0.0
    %2138 = vmatpush1.msra.mxu0 0.0
    %2139 = vmatprep.subr.mxu0 0.0
    %2140 = vmatpush1.msra.mxu0 0.0
    %2141 = vmatprep.subr.mxu0 0.0
    %2142 = vmatpush1.msra.mxu0 0.0
    %2143 = vmatprep.subr.mxu0 0.0
    %2144 = vmatpush1.msra.mxu0 0.0
    %2145 = vmatprep.subr.mxu0 0.0
    %2146 = vmatpush1.msra.mxu0 0.0
    %2147 = vmatprep.subr.mxu0 0.0
    %2148 = vmatpush1.msra.mxu0 0.0
    %2149 = vmatprep.subr.mxu0 0.0
    %2150 = vmatpush1.msra.mxu0 0.0
    %2151 = vmatprep.subr.mxu0 0.0
    %2152 = vmatpush1.msra.mxu0 0.0
    %2153 = vmatprep.subr.mxu0 0.0
    %2154 = vmatpush1.msra.mxu0 0.0
    %2155 = vmatprep.subr.mxu0 0.0
    %2156 = vmatpush1.msra.mxu0 0.0
    %2157 = vmatprep.subr.mxu0 0.0
    %2158 = vmatpush1.msra.mxu0 0.0
    %2159 = vmatprep.subr.mxu0 0.0
    %2160 = vmatpush1.msra.mxu0 %v1338
    %2161 = vmatprep.subr.mxu0 0.0
    %2162 = vmatpush1.msra.mxu0 %v1337
    %2163 = vmatprep.subr.mxu0 0.0
    %2164 = vmatpush1.msra.mxu0 %v1336
    %2165 = vmatprep.subr.mxu0 0.0
    %2166 = vmatpush1.msra.mxu0 %v1335
    %2167 = vmatprep.subr.mxu0 0.0
    %2168 = vmatpush2.msra.mxu0 0.0
    %2169 = vmatprep.subr.mxu0 0.0
    %2170 = vmatpush2.msra.mxu0 0.0
    %2171 = vmatprep.subr.mxu0 0.0
    %2172 = vmatpush2.msra.mxu0 0.0
    %2173 = vmatprep.subr.mxu0 0.0
    %2174 = vmatpush2.msra.mxu0 0.0
    %2175 = vmatprep.subr.mxu0 0.0
    %2176 = vmatpush2.msra.mxu0 0.0
    %2177 = vmatprep.subr.mxu0 0.0
    %2178 = vmatpush2.msra.mxu0 0.0
    %2179 = vmatprep.subr.mxu0 0.0
    %2180 = vmatpush2.msra.mxu0 0.0
    %2181 = vmatprep.subr.mxu0 0.0
    %2182 = vmatpush2.msra.mxu0 0.0
    %2183 = vmatprep.subr.mxu0 0.0
    %2184 = vmatpush2.msra.mxu0 0.0
    %2185 = vmatprep.subr.mxu0 0.0
    %2186 = vmatpush2.msra.mxu0 0.0
    %2187 = vmatprep.subr.mxu0 0.0
    %2188 = vmatpush2.msra.mxu0 0.0
    %2189 = vmatprep.subr.mxu0 0.0
    %2190 = vmatpush2.msra.mxu0 0.0
    %2191 = vmatprep.subr.mxu0 0.0
    %2192 = vmatpush2.msra.mxu0 0.0
    %2193 = vmatprep.subr.mxu0 0.0
    %2194 = vmatpush2.msra.mxu0 0.0
    %2195 = vmatprep.subr.mxu0 0.0
    %2196 = vmatpush2.msra.mxu0 0.0
    %2197 = vmatprep.subr.mxu0 0.0
    %2198 = vmatpush2.msra.mxu0 0.0
    %2199 = vmatprep.mubr.f32.mxu0 0.0
    %2200 = vmatmul.mubr.f32.gmra.mxu0 %v2127
    %v2201 = vpop.f32.mrf.mxu0
    %v2202 = vadd.f32 %v2125, %v2201
    %v2203 = vpop.f32.mrf.mxu0
    %2204 = vmatprep.mubr.f32.mxu0 0.0
    %2205 = vmatmul.mubr.f32.gmra.mxu0 %v2130
    %v2206 = vpop.f32.mrf.mxu0
    %v2207 = vadd.f32 %v2125, %v2206
    %v2208 = vpop.f32.mrf.mxu0
    %2209 = vmatprep.mubr.f32.mxu0 0.0
    %2210 = vmatmul.mubr.f32.gmra.mxu0 %v2133
    %v2211 = vpop.f32.mrf.mxu0
    %v2212 = vadd.f32 %v2125, %v2211
    %v2213 = vpop.f32.mrf.mxu0
    %2214 = vdwg.mxu0
    %v2215 = vmul.f32 %v2202, %v2202
    %v2216 = vmul.f32 %v2207, %v2207
    %v2217 = vmul.f32 %v2212, %v2212
    %v2218 = vmul.f32 %v2202, %v2215
    %v2219 = vmul.f32 %v2207, %v2216
    %v2220 = vmul.f32 %v2212, %v2217
    %v2221 = vmul.f32 %v2218, 0.044715
    %v2222 = vmul.f32 %v2219, 0.044715
    %v2223 = vmul.f32 %v2220, 0.044715
    %v2224 = vadd.f32 %v2202, %v2221
    %v2225 = vadd.f32 %v2207, %v2222
    %v2226 = vadd.f32 %v2212, %v2223
    %v2227 = vmul.f32 %v2224, 0.7978846
    %v2228 = vmul.f32 %v2225, 0.7978846
    %v2229 = vmul.f32 %v2226, 0.7978846
    %v2230 = vtanh.pop %v2227
    %v2231 = vtanh.pop %v2228
    %v2232 = vtanh.pop %v2229
    %v2233 = vadd.f32 %v2230, 1.0
    %v2234 = vadd.f32 %v2231, 1.0
    %v2235 = vadd.f32 %v2232, 1.0
    %v2236 = vmul.f32 %v2233, 0.5
    %v2237 = vmul.f32 %v2234, 0.5
    %v2238 = vmul.f32 %v2235, 0.5
    %v2239 = vmul.f32 %v2202, %v2236
    %v2240 = vmul.f32 %v2207, %v2237
    %v2241 = vmul.f32 %v2212, %v2238
    %v2242 = vlaneseq
    %v2243 = vshrl.u32 %v2242, 7
    %v2244 = vsub.s32 0, %v2243
    %v2245 = vrot.slane %v1342, %v2244
    %v2247 = vsel %vm1225, %v2239, 0
    %v2250 = vsel %vm1225, %v2240, 0
    %v2253 = vsel %vm1225, %v2241, 0
    %v2256 = vsel %vm1235, %v1341, 0
    %2258 = vmatprep.subr.mxu0 0.0
    %2259 = vmatpush1.msra.mxu0 0.0
    %2260 = vmatprep.subr.mxu0 0.0
    %2261 = vmatpush1.msra.mxu0 0.0
    %2262 = vmatprep.subr.mxu0 0.0
    %2263 = vmatpush1.msra.mxu0 0.0
    %2264 = vmatprep.subr.mxu0 0.0
    %2265 = vmatpush1.msra.mxu0 0.0
    %2266 = vmatprep.subr.mxu0 0.0
    %2267 = vmatpush1.msra.mxu0 0.0
    %2268 = vmatprep.subr.mxu0 0.0
    %2269 = vmatpush1.msra.mxu0 0.0
    %2270 = vmatprep.subr.mxu0 0.0
    %2271 = vmatpush1.msra.mxu0 0.0
    %2272 = vmatprep.subr.mxu0 0.0
    %2273 = vmatpush1.msra.mxu0 0.0
    %2274 = vmatprep.subr.mxu0 0.0
    %2275 = vmatpush1.msra.mxu0 0.0
    %2276 = vmatprep.subr.mxu0 0.0
    %2277 = vmatpush1.msra.mxu0 0.0
    %2278 = vmatprep.subr.mxu0 0.0
    %2279 = vmatpush1.msra.mxu0 0.0
    %2280 = vmatprep.subr.mxu0 0.0
    %2281 = vmatpush1.msra.mxu0 0.0
    %2282 = vmatprep.subr.mxu0 0.0
    %2283 = vmatpush1.msra.mxu0 0.0
    %2284 = vmatprep.subr.mxu0 0.0
    %2285 = vmatpush1.msra.mxu0 0.0
    %2286 = vmatprep.subr.mxu0 0.0
    %2287 = vmatpush1.msra.mxu0 %v2256
    %2288 = vmatprep.subr.mxu0 0.0
    %2289 = vmatpush1.msra.mxu0 %v1340
    %2290 = vmatprep.subr.mxu0 0.0
    %2291 = vmatpush2.msra.mxu0 0.0
    %2292 = vmatprep.subr.mxu0 0.0
    %2293 = vmatpush2.msra.mxu0 0.0
    %2294 = vmatprep.subr.mxu0 0.0
    %2295 = vmatpush2.msra.mxu0 0.0
    %2296 = vmatprep.subr.mxu0 0.0
    %2297 = vmatpush2.msra.mxu0 0.0
    %2298 = vmatprep.subr.mxu0 0.0
    %2299 = vmatpush2.msra.mxu0 0.0
    %2300 = vmatprep.subr.mxu0 0.0
    %2301 = vmatpush2.msra.mxu0 0.0
    %2302 = vmatprep.subr.mxu0 0.0
    %2303 = vmatpush2.msra.mxu0 0.0
    %2304 = vmatprep.subr.mxu0 0.0
    %2305 = vmatpush2.msra.mxu0 0.0
    %2306 = vmatprep.subr.mxu0 0.0
    %2307 = vmatpush2.msra.mxu0 0.0
    %2308 = vmatprep.subr.mxu0 0.0
    %2309 = vmatpush2.msra.mxu0 0.0
    %2310 = vmatprep.subr.mxu0 0.0
    %2311 = vmatpush2.msra.mxu0 0.0
    %2312 = vmatprep.subr.mxu0 0.0
    %2313 = vmatpush2.msra.mxu0 0.0
    %2314 = vmatprep.subr.mxu0 0.0
    %2315 = vmatpush2.msra.mxu0 0.0
    %2316 = vmatprep.subr.mxu0 0.0
    %2317 = vmatpush2.msra.mxu0 0.0
    %2318 = vmatprep.subr.mxu0 0.0
    %2319 = vmatpush2.msra.mxu0 0.0
    %2320 = vmatprep.subr.mxu0 0.0
    %2321 = vmatpush2.msra.mxu0 0.0
    %2322 = vmatprep.mubr.f32.mxu0 0.0
    %2323 = vmatmul.mubr.f32.gmra.mxu0 %v2247
    %v2324 = vpop.f32.mrf.mxu0
    %v2325 = vadd.f32 %v2245, %v2324
    %v2326 = vpop.f32.mrf.mxu0
    %2327 = vmatprep.mubr.f32.mxu0 0.0
    %2328 = vmatmul.mubr.f32.gmra.mxu0 %v2250
    %v2329 = vpop.f32.mrf.mxu0
    %v2330 = vadd.f32 %v2245, %v2329
    %v2331 = vpop.f32.mrf.mxu0
    %2332 = vmatprep.mubr.f32.mxu0 0.0
    %2333 = vmatmul.mubr.f32.gmra.mxu0 %v2253
    %v2334 = vpop.f32.mrf.mxu0
    %v2335 = vadd.f32 %v2245, %v2334
    %v2336 = vpop.f32.mrf.mxu0
    %2337 = vdwg.mxu0
    %v2338 = vadd.f32 %v2066, %v2325
    %v2339 = vadd.f32 %v2067, %v2330
    %v2340 = vadd.f32 %v2068, %v2335
    %v2342 = vsel %vm448, %v40, 0
    %v2345 = vsel %vm458, %v2340, 0
    %2347 = vmatprep.subr.mxu0 0.0
    %2348 = vmatpush1.msra.mxu0 0.0
    %2349 = vmatprep.subr.mxu0 0.0
    %2350 = vmatpush1.msra.mxu0 0.0
    %2351 = vmatprep.subr.mxu0 0.0
    %2352 = vmatpush1.msra.mxu0 0.0
    %2353 = vmatprep.subr.mxu0 0.0
    %2354 = vmatpush1.msra.mxu0 0.0
    %2355 = vmatprep.subr.mxu0 0.0
    %2356 = vmatpush1.msra.mxu0 0.0
    %2357 = vmatprep.subr.mxu0 0.0
    %2358 = vmatpush1.msra.mxu0 0.0
    %2359 = vmatprep.subr.mxu0 0.0
    %2360 = vmatpush1.msra.mxu0 0.0
    %2361 = vmatprep.subr.mxu0 0.0
    %2362 = vmatpush1.msra.mxu0 0.0
    %2363 = vmatprep.subr.mxu0 0.0
    %2364 = vmatpush1.msra.mxu0 0.0
    %2365 = vmatprep.subr.mxu0 0.0
    %2366 = vmatpush1.msra.mxu0 0.0
    %2367 = vmatprep.subr.mxu0 0.0
    %2368 = vmatpush1.msra.mxu0 0.0
    %2369 = vmatprep.subr.mxu0 0.0
    %2370 = vmatpush1.msra.mxu0 0.0
    %2371 = vmatprep.subr.mxu0 0.0
    %2372 = vmatpush1.msra.mxu0 0.0
    %2373 = vmatprep.subr.mxu0 0.0
    %2374 = vmatpush1.msra.mxu0 %v2345
    %2375 = vmatprep.subr.mxu0 0.0
    %2376 = vmatpush1.msra.mxu0 %v2339
    %2377 = vmatprep.subr.mxu0 0.0
    %2378 = vmatpush1.msra.mxu0 %v2338
    %2379 = vmatprep.subr.mxu0 0.0
    %2380 = vmatpush2.msra.mxu0 0.0
    %2381 = vmatprep.subr.mxu0 0.0
    %2382 = vmatpush2.msra.mxu0 0.0
    %2383 = vmatprep.subr.mxu0 0.0
    %2384 = vmatpush2.msra.mxu0 0.0
    %2385 = vmatprep.subr.mxu0 0.0
    %2386 = vmatpush2.msra.mxu0 0.0
    %2387 = vmatprep.subr.mxu0 0.0
    %2388 = vmatpush2.msra.mxu0 0.0
    %2389 = vmatprep.subr.mxu0 0.0
    %2390 = vmatpush2.msra.mxu0 0.0
    %2391 = vmatprep.subr.mxu0 0.0
    %2392 = vmatpush2.msra.mxu0 0.0
    %2393 = vmatprep.subr.mxu0 0.0
    %2394 = vmatpush2.msra.mxu0 0.0
    %2395 = vmatprep.subr.mxu0 0.0
    %2396 = vmatpush2.msra.mxu0 0.0
    %2397 = vmatprep.subr.mxu0 0.0
    %2398 = vmatpush2.msra.mxu0 0.0
    %2399 = vmatprep.subr.mxu0 0.0
    %2400 = vmatpush2.msra.mxu0 0.0
    %2401 = vmatprep.subr.mxu0 0.0
    %2402 = vmatpush2.msra.mxu0 0.0
    %2403 = vmatprep.subr.mxu0 0.0
    %2404 = vmatpush2.msra.mxu0 0.0
    %2405 = vmatprep.subr.mxu0 0.0
    %2406 = vmatpush2.msra.mxu0 0.0
    %2407 = vmatprep.subr.mxu0 0.0
    %2408 = vmatpush2.msra.mxu0 0.0
    %2409 = vmatprep.subr.mxu0 0.0
    %2410 = vmatpush2.msra.mxu0 0.0
    %2411 = vmatprep.mubr.f32.mxu0 0.0
    %2412 = vmatmul.mubr.f32.gmra.mxu0 %v2342
    %v2413 = vpop.f32.mrf.mxu0
    %v2414 = vadd.f32 0.0, %v2413
    %v2415 = vpop.f32.mrf.mxu0
    %2416 = vdwg.mxu0
    %2417 = vst.msk [vmem:[#allocation5] sm:$0x3] %vm296, %v2414
    // Predicated region
    $region14: #{vit_forward.1} parent=1 // pred_check
      _
    $region15: #{vit_forward.1} parent=1 // pred_check_branch
      %2419 = sbr.rel (0) target = $region17
    $region16: #{vit_forward.1} parent=1 // pred_region
      %s2421 = ssub.s32 32, 32
      %2422 = vsyncadd [#allocation4], %s2421
      %s2424 = sshll.u32 [#allocation5], 4
      %s2425 = int_to_ptr.vmem [resolvable:$true] %s2424
      %2427 = dma.vmem_to_hbm [thread:$0]  %s2425, 32, %s2, [#allocation4]
    $region17: #{vit_forward.1} parent=1 // pred_fallthru
      _
    // Predicated region
    $region18: #{vit_forward.1} parent=1 // pred_check
      _
    $region19: #{vit_forward.1} parent=1 // pred_check_branch
      %2429 = sbr.rel (0) target = $region21
    $region20: #{vit_forward.1} parent=1 // pred_region
      %2430 = dma.done [#allocation4], 32
    $region21: #{vit_forward.1} parent=1 // pred_fallthru
      _
    %2431 = vsyncpa [#allocation3], 1
    %2432 = vsyncpa [#allocation4], 1

</llo_original>
